<compile_context>
chip_gen: v6e
topology: v6e:2x2x1
jax: 0.10.0
libtpu: 0.0.40
codegen_flags: <defaults>
</compile_context>

<pallas_src>
import functools

import jax
import jax.numpy as jnp
from jax.experimental import pallas as pl
from jax.experimental.pallas import tpu as pltpu


# ----------------------------------------------------------------------------
# Kernel: one batch tile of  relu(x @ W1 + b1) @ W2 + b2  with resident weights
# ----------------------------------------------------------------------------
def fcnn_kernel(x_ref, w1_ref, b1_ref, w2_ref, b2_ref, o_ref, *, tk, nk):
    x = x_ref[...]                                   # (tm, D_in) bf16
    acc = jnp.zeros((x.shape[0], o_ref.shape[1]), jnp.float32)
    # nk is a trace-time constant (small); static ref slices are free views.
    for k in range(nk):
        s = k * tk
        # First linear, this hidden chunk: (tm, D_in) @ (D_in, tk) -> f32
        h = jnp.dot(x, w1_ref[:, s:s + tk], preferred_element_type=jnp.float32)
        # bias1 + ReLU in f32 on the VPU
        h = jnp.maximum(h + b1_ref[:, s:s + tk], 0.0)
        # Second linear, accumulated in f32: (tm, tk) @ (tk, D_out)
        acc = acc + jnp.dot(h.astype(w2_ref.dtype), w2_ref[s:s + tk, :],
                            preferred_element_type=jnp.float32)
    # bias2 once; single lane-dense f32 store (no scratch copy).
    o_ref[...] = (acc + b2_ref[...]).astype(o_ref.dtype)


# ----------------------------------------------------------------------------
# Wrapper
# ----------------------------------------------------------------------------
def _pick_tm(batch):
    # Large MXU-aligned batch tiles; pad the batch instead of shrinking tm.
    for t in (256, 128):
        if batch >= t:
            return t
    # Small batches: one tile, rounded up to a bf16-sublane-friendly multiple.
    return max(16, -(-batch // 16) * 16)


def _pick_tk(mid):
    for t in (2048, 1024, 512, 256, 128):
        if mid % t == 0:
            return t
    return mid  # odd sizes: single full-width pass


def _build_specs(tm, d_in, mid, d_out, single_buffer_weights):
    # Resident (never-changing) blocks: constant index map; optionally
    # single-buffered so v7x's 64 MiB/TC isn't spent on a useless 2nd copy.
    wkw = {"pipeline_mode": pl.Buffered(1)} if single_buffer_weights else {}
    in_specs = [
        pl.BlockSpec((tm, d_in), lambda i: (i, 0)),              # x tile
        pl.BlockSpec((d_in, mid), lambda i: (0, 0), **wkw),      # W1 (resident)
        pl.BlockSpec((1, mid), lambda i: (0, 0), **wkw),         # b1 (resident)
        pl.BlockSpec((mid, d_out), lambda i: (0, 0), **wkw),     # W2 (resident)
        pl.BlockSpec((1, d_out), lambda i: (0, 0), **wkw),       # b2 (resident)
    ]
    out_specs = pl.BlockSpec((tm, d_out), lambda i: (i, 0))
    return in_specs, out_specs


def fcnn_forward(x, w1, b1, w2, b2, *,
                 compute_dtype=jnp.bfloat16,
                 out_dtype=jnp.float32,
                 tm=None, tk=None):
    """Fused Linear -> ReLU -> Linear.

    x : (B, D_in)
    w1: (D_in, mid),  b1: (1, mid)     (first Linear, weight pre-transposed)
    w2: (mid, D_out), b2: (1, D_out)   (second Linear, weight pre-transposed)
    """
    B, d_in = x.shape
    mid = w1.shape[1]
    d_out = w2.shape[1]
    assert w2.shape[0] == mid

    if tm is None:
        tm = _pick_tm(B)
    if tk is None:
        tk = _pick_tk(mid)
    assert mid % tk == 0
    nk = mid // tk

    # Pad the batch up to a multiple of tm (e.g. 5000 -> 5120 with tm=256)
    # rather than collapsing the tile size; padding is sliced off afterwards.
    padded_b = -(-B // tm) * tm

    xc = x if x.dtype == compute_dtype else x.astype(compute_dtype)
    if padded_b != B:
        xc = jnp.pad(xc, ((0, padded_b - B), (0, 0)))
    w1c = w1 if w1.dtype == compute_dtype else w1.astype(compute_dtype)
    w2c = w2 if w2.dtype == compute_dtype else w2.astype(compute_dtype)
    b1f = b1.astype(jnp.float32).reshape(1, mid)
    b2f = b2.astype(jnp.float32).reshape(1, d_out)

    cb = jnp.dtype(compute_dtype).itemsize
    ob = jnp.dtype(out_dtype).itemsize
    # VMEM: resident weights (single-buffered) + double-buffered x/out tiles
    # + in-kernel f32 intermediates (h chunk + accumulator).
    vmem_needed = (d_in * mid * cb + mid * d_out * cb + (mid + d_out) * 4
                   + 2 * tm * d_in * cb + 2 * tm * d_out * ob
                   + tm * tk * 4 + tm * d_out * 4)
    vmem_limit = min(60 << 20,                      # stay inside v7x 64 MiB/TC
                     max(32 << 20, int(vmem_needed * 1.3) + (4 << 20)))

    flops = 2 * padded_b * d_in * mid + 2 * padded_b * mid * d_out
    bytes_accessed = (padded_b * d_in * cb + d_in * mid * cb
                      + mid * d_out * cb + (mid + d_out) * 4
                      + padded_b * d_out * ob)

    kernel = functools.partial(fcnn_kernel, tk=tk, nk=nk)
    grid = (padded_b // tm,)

    def _call(single_buffer_weights):
        in_specs, out_specs = _build_specs(tm, d_in, mid, d_out,
                                           single_buffer_weights)
        return pl.pallas_call(
            kernel,
            out_shape=jax.ShapeDtypeStruct((padded_b, d_out), out_dtype),
            grid_spec=pltpu.PrefetchScalarGridSpec(
                num_scalar_prefetch=0,
                grid=grid,
                in_specs=in_specs,
                out_specs=out_specs,
            ),
            compiler_params=pltpu.CompilerParams(
                dimension_semantics=("parallel",),
                vmem_limit_bytes=vmem_limit),
            cost_estimate=pl.CostEstimate(flops=flops, transcendentals=0,
                                          bytes_accessed=bytes_accessed),
        )(xc, w1c, b1f, w2c, b2f)

    try:
        out = _call(True)           # single-buffer resident weight blocks
    except Exception:               # fallback if Buffered(1) is unsupported
        out = _call(False)

    return out[:B] if padded_b != B else out


# ----------------------------------------------------------------------------
# DMNet-style multi-view wrapper (FCNN branch per view, num_fc=2)
# ----------------------------------------------------------------------------
def init_linear_params(key, fan_in, fan_out):
    """PyTorch nn.Linear default init: U(-1/sqrt(fan_in), 1/sqrt(fan_in)).
    Weight returned already transposed to (fan_in, fan_out)."""
    kw, kb = jax.random.split(key)
    bound = 1.0 / (fan_in ** 0.5)
    w = jax.random.uniform(kw, (fan_in, fan_out), jnp.float32,
                           minval=-bound, maxval=bound)
    b = jax.random.uniform(kb, (1, fan_out), jnp.float32,
                           minval=-bound, maxval=bound)
    return w, b


def init_dmnet_params(key, in_dims, out_dim, mid):
    """One FCNN (Linear(in, mid) -> ReLU -> Linear(mid, out)) per view.
    Weights are cast to bf16 ONCE here (biases stay f32), so no per-chunk
    recast happens inside the forward."""
    params = []
    for dim in in_dims:
        key, k1, k2 = jax.random.split(key, 3)
        w1, b1 = init_linear_params(k1, dim[-1], mid)
        w2, b2 = init_linear_params(k2, mid, out_dim)
        params.append((w1.astype(jnp.bfloat16), b1,
                       w2.astype(jnp.bfloat16), b2))
    return params


def dmnet_forward(params, in_data, batch_size=5000):
    """Apply each view's fused FCNN kernel; chunk batches > 5000 like the
    PyTorch reference.  Inputs are cast to bf16 once per view (not per chunk);
    each 5000-row chunk is padded to a multiple of the batch tile internally."""
    outs = []
    for (w1, b1, w2, b2), x in zip(params, in_data):
        xc = x.astype(jnp.bfloat16)
        n = xc.shape[0]
        if n > batch_size:
            chunks = [fcnn_forward(xc[s:s + batch_size], w1, b1, w2, b2)
                      for s in range(0, n, batch_size)]
            outs.append(jnp.concatenate(chunks, axis=0))
        else:
            outs.append(fcnn_forward(xc, w1, b1, w2, b2))
    return outs


# ----------------------------------------------------------------------------
# Pure-JAX reference mirroring the kernel's bf16/f32 mixed precision
# ----------------------------------------------------------------------------
def _ref_fcnn(x, w1, b1, w2, b2):
    xb = x.astype(jnp.bfloat16)
    h = jnp.dot(xb, w1.astype(jnp.bfloat16),
                preferred_element_type=jnp.float32)
    h = jnp.maximum(h + b1.astype(jnp.float32), 0.0)
    out = jnp.dot(h.astype(jnp.bfloat16), w2.astype(jnp.bfloat16),
                  preferred_element_type=jnp.float32)
    return out + b2.astype(jnp.float32)


# ----------------------------------------------------------------------------
# Demo / correctness check
# ----------------------------------------------------------------------------
if __name__ == "__main__":
    # Small shapes consistent with DMNet's FCNN branch (scaled down from
    # input_dim=4096 / mid=2048 / out_dim=1024).
    B = 8
    OUT_DIM = 128
    MID = 256
    IN_DIMS = [(512,), (256,)]   # two "image feature" views -> FCNN per view

    key = jax.random.PRNGKey(0)
    kp, kx0, kx1 = jax.random.split(key, 3)

    params = init_dmnet_params(kp, IN_DIMS, OUT_DIM, MID)
    in_data = [
        jax.random.normal(kx0, (B, IN_DIMS[0][-1]), jnp.float32),
        jax.random.normal(kx1, (B, IN_DIMS[1][-1]), jnp.float32),
    ]

    outs = jax.block_until_ready(dmnet_forward(params, in_data))

    ok = True
    for (w1, b1, w2, b2), x, out in zip(params, in_data, outs):
        assert out.shape == (B, OUT_DIM)
        ref = _ref_fcnn(x, w1, b1, w2, b2)
        ok = ok and bool(jnp.allclose(out, ref, atol=2e-2, rtol=2e-2))
    assert ok

    print("KERNEL_OK")
</pallas_src>

<mosaic_0001>
module attributes {stable_mosaic.version = 11 : i64} {
  func.func @fcnn_kernel(%arg0: i32, %arg1: memref<16x512xbf16, #tpu.memory_space<vmem>>, %arg2: memref<512x256xbf16, #tpu.memory_space<vmem>>, %arg3: memref<1x256xf32, #tpu.memory_space<vmem>>, %arg4: memref<256x128xbf16, #tpu.memory_space<vmem>>, %arg5: memref<1x128xf32, #tpu.memory_space<vmem>>, %arg6: memref<16x128xf32, #tpu.memory_space<vmem>>) attributes {dimension_semantics = [#tpu.dimension_semantics<parallel>], iteration_bounds = array<i64: 1>, scalar_prefetch = 0 : i64, scratch_operands = 0 : i64, tpu.core_type = #tpu.core_type<tc>, window_params = [{transform_indices = @transform_0, window_bounds = array<i64: 16, 512>}, {pipeline_mode = #tpu.pipeline_mode<synchronous>, transform_indices = @transform_1, window_bounds = array<i64: 512, 256>}, {pipeline_mode = #tpu.pipeline_mode<synchronous>, transform_indices = @transform_2, window_bounds = array<i64: 1, 256>}, {pipeline_mode = #tpu.pipeline_mode<synchronous>, transform_indices = @transform_3, window_bounds = array<i64: 256, 128>}, {pipeline_mode = #tpu.pipeline_mode<synchronous>, transform_indices = @transform_4, window_bounds = array<i64: 1, 128>}, {transform_indices = @transform_5, window_bounds = array<i64: 16, 128>}]} {
    %c0 = arith.constant 0 : index
    %c0_0 = arith.constant 0 : index
    %0 = vector.load %arg1[%c0, %c0_0] : memref<16x512xbf16, #tpu.memory_space<vmem>>, vector<16x512xbf16>
    %cst = arith.constant 0.000000e+00 : f32
    %1 = vector.broadcast %cst : f32 to vector<16x128xf32>
    %c0_1 = arith.constant 0 : index
    %c0_2 = arith.constant 0 : index
    %2 = vector.load %arg2[%c0_1, %c0_2] : memref<512x256xbf16, #tpu.memory_space<vmem>>, vector<512x256xbf16>
    %cst_3 = arith.constant dense<0.000000e+00> : vector<16x256xf32>
    %3 = tpu.matmul %0, %2, %cst_3 {dimension_numbers = #tpu.dot_dimension_numbers<[1], [0], [0], [1], [0, 0, 1, 1], [], []>} : vector<16x512xbf16>, vector<512x256xbf16>, vector<16x256xf32> -> vector<16x256xf32>
    %c0_4 = arith.constant 0 : index
    %c0_5 = arith.constant 0 : index
    %4 = vector.load %arg3[%c0_4, %c0_5] : memref<1x256xf32, #tpu.memory_space<vmem>>, vector<1x256xf32>
    %5 = vector.broadcast %4 : vector<1x256xf32> to vector<16x256xf32>
    %6 = arith.addf %3, %5 : vector<16x256xf32>
    %cst_6 = arith.constant 0.000000e+00 : f32
    %7 = vector.broadcast %cst_6 : f32 to vector<16x256xf32>
    %8 = arith.maximumf %6, %7 : vector<16x256xf32>
    %9 = arith.truncf %8 : vector<16x256xf32> to vector<16x256xbf16>
    %c0_7 = arith.constant 0 : index
    %c0_8 = arith.constant 0 : index
    %10 = vector.load %arg4[%c0_7, %c0_8] : memref<256x128xbf16, #tpu.memory_space<vmem>>, vector<256x128xbf16>
    %cst_9 = arith.constant dense<0.000000e+00> : vector<16x128xf32>
    %11 = tpu.matmul %9, %10, %cst_9 {dimension_numbers = #tpu.dot_dimension_numbers<[1], [0], [0], [1], [0, 0, 1, 1], [], []>} : vector<16x256xbf16>, vector<256x128xbf16>, vector<16x128xf32> -> vector<16x128xf32>
    %12 = arith.addf %1, %11 : vector<16x128xf32>
    %c0_10 = arith.constant 0 : index
    %c0_11 = arith.constant 0 : index
    %13 = vector.load %arg5[%c0_10, %c0_11] : memref<1x128xf32, #tpu.memory_space<vmem>>, vector<1x128xf32>
    %14 = vector.broadcast %13 : vector<1x128xf32> to vector<16x128xf32>
    %15 = arith.addf %12, %14 : vector<16x128xf32>
    %c0_12 = arith.constant 0 : index
    %c0_13 = arith.constant 0 : index
    %16 = vector.load %arg6[%c0_12, %c0_13] : memref<16x128xf32, #tpu.memory_space<vmem>>, vector<16x128xf32>
    tpu.vector_store %arg6[%c0_12, %c0_13], %15 {strides = array<i32>} : memref<16x128xf32, #tpu.memory_space<vmem>>, vector<16x128xf32>,
    return
  }
  func.func @transform_0(%arg0: i32) -> (i32, i32) {
    %c0_i32 = arith.constant 0 : i32
    %c0_i32_0 = arith.constant 0 : i32
    return %arg0, %c0_i32 : i32, i32
  }
  func.func @transform_1(%arg0: i32) -> (i32, i32) {
    %c0_i32 = arith.constant 0 : i32
    %c0_i32_0 = arith.constant 0 : i32
    %c0_i32_1 = arith.constant 0 : i32
    return %c0_i32, %c0_i32_0 : i32, i32
  }
  func.func @transform_2(%arg0: i32) -> (i32, i32) {
    %c0_i32 = arith.constant 0 : i32
    %c0_i32_0 = arith.constant 0 : i32
    %c0_i32_1 = arith.constant 0 : i32
    return %c0_i32, %c0_i32_0 : i32, i32
  }
  func.func @transform_3(%arg0: i32) -> (i32, i32) {
    %c0_i32 = arith.constant 0 : i32
    %c0_i32_0 = arith.constant 0 : i32
    %c0_i32_1 = arith.constant 0 : i32
    return %c0_i32, %c0_i32_0 : i32, i32
  }
  func.func @transform_4(%arg0: i32) -> (i32, i32) {
    %c0_i32 = arith.constant 0 : i32
    %c0_i32_0 = arith.constant 0 : i32
    %c0_i32_1 = arith.constant 0 : i32
    return %c0_i32, %c0_i32_0 : i32, i32
  }
  func.func @transform_5(%arg0: i32) -> (i32, i32) {
    %c0_i32 = arith.constant 0 : i32
    %c0_i32_0 = arith.constant 0 : i32
    return %arg0, %c0_i32 : i32, i32
  }
}

module attributes {stable_mosaic.version = 11 : i64} {
  func.func @fcnn_kernel(%arg0: i32, %arg1: memref<16x512xbf16, #tpu.memory_space<vmem>>, %arg2: memref<512x256xbf16, #tpu.memory_space<vmem>>, %arg3: memref<1x256xf32, #tpu.memory_space<vmem>>, %arg4: memref<256x128xbf16, #tpu.memory_space<vmem>>, %arg5: memref<1x128xf32, #tpu.memory_space<vmem>>, %arg6: memref<16x128xf32, #tpu.memory_space<vmem>>) attributes {dimension_semantics = [#tpu.dimension_semantics<parallel>], iteration_bounds = array<i64: 1>, scalar_prefetch = 0 : i64, scratch_operands = 0 : i64, tpu.core_type = #tpu.core_type<tc>, window_params = [{transform_indices = @transform_0, window_bounds = array<i64: 16, 512>}, {pipeline_mode = #tpu.pipeline_mode<synchronous>, transform_indices = @transform_1, window_bounds = array<i64: 512, 256>}, {pipeline_mode = #tpu.pipeline_mode<synchronous>, transform_indices = @transform_2, window_bounds = array<i64: 1, 256>}, {pipeline_mode = #tpu.pipeline_mode<synchronous>, transform_indices = @transform_3, window_bounds = array<i64: 256, 128>}, {pipeline_mode = #tpu.pipeline_mode<synchronous>, transform_indices = @transform_4, window_bounds = array<i64: 1, 128>}, {transform_indices = @transform_5, window_bounds = array<i64: 16, 128>}]} {
    %c0 = arith.constant 0 : index
    %c0_0 = arith.constant 0 : index
    %0 = vector.load %arg1[%c0, %c0_0] : memref<16x512xbf16, #tpu.memory_space<vmem>>, vector<16x512xbf16>
    %cst = arith.constant 0.000000e+00 : f32
    %1 = vector.broadcast %cst : f32 to vector<16x128xf32>
    %c0_1 = arith.constant 0 : index
    %c0_2 = arith.constant 0 : index
    %2 = vector.load %arg2[%c0_1, %c0_2] : memref<512x256xbf16, #tpu.memory_space<vmem>>, vector<512x256xbf16>
    %cst_3 = arith.constant dense<0.000000e+00> : vector<16x256xf32>
    %3 = tpu.matmul %0, %2, %cst_3 {dimension_numbers = #tpu.dot_dimension_numbers<[1], [0], [0], [1], [0, 0, 1, 1], [], []>} : vector<16x512xbf16>, vector<512x256xbf16>, vector<16x256xf32> -> vector<16x256xf32>
    %c0_4 = arith.constant 0 : index
    %c0_5 = arith.constant 0 : index
    %4 = vector.load %arg3[%c0_4, %c0_5] : memref<1x256xf32, #tpu.memory_space<vmem>>, vector<1x256xf32>
    %5 = vector.broadcast %4 : vector<1x256xf32> to vector<16x256xf32>
    %6 = arith.addf %3, %5 : vector<16x256xf32>
    %cst_6 = arith.constant 0.000000e+00 : f32
    %7 = vector.broadcast %cst_6 : f32 to vector<16x256xf32>
    %8 = arith.maximumf %6, %7 : vector<16x256xf32>
    %9 = arith.truncf %8 : vector<16x256xf32> to vector<16x256xbf16>
    %c0_7 = arith.constant 0 : index
    %c0_8 = arith.constant 0 : index
    %10 = vector.load %arg4[%c0_7, %c0_8] : memref<256x128xbf16, #tpu.memory_space<vmem>>, vector<256x128xbf16>
    %cst_9 = arith.constant dense<0.000000e+00> : vector<16x128xf32>
    %11 = tpu.matmul %9, %10, %cst_9 {dimension_numbers = #tpu.dot_dimension_numbers<[1], [0], [0], [1], [0, 0, 1, 1], [], []>} : vector<16x256xbf16>, vector<256x128xbf16>, vector<16x128xf32> -> vector<16x128xf32>
    %12 = arith.addf %1, %11 : vector<16x128xf32>
    %c0_10 = arith.constant 0 : index
    %c0_11 = arith.constant 0 : index
    %13 = vector.load %arg5[%c0_10, %c0_11] : memref<1x128xf32, #tpu.memory_space<vmem>>, vector<1x128xf32>
    %14 = vector.broadcast %13 : vector<1x128xf32> to vector<16x128xf32>
    %15 = arith.addf %12, %14 : vector<16x128xf32>
    %c0_12 = arith.constant 0 : index
    %c0_13 = arith.constant 0 : index
    %16 = vector.load %arg6[%c0_12, %c0_13] : memref<16x128xf32, #tpu.memory_space<vmem>>, vector<16x128xf32>
    tpu.vector_store %arg6[%c0_12, %c0_13], %15 {strides = array<i32>} : memref<16x128xf32, #tpu.memory_space<vmem>>, vector<16x128xf32>,
    return
  }
  func.func @transform_0(%arg0: i32) -> (i32, i32) {
    %c0_i32 = arith.constant 0 : i32
    %c0_i32_0 = arith.constant 0 : i32
    return %arg0, %c0_i32 : i32, i32
  }
  func.func @transform_1(%arg0: i32) -> (i32, i32) {
    %c0_i32 = arith.constant 0 : i32
    %c0_i32_0 = arith.constant 0 : i32
    %c0_i32_1 = arith.constant 0 : i32
    return %c0_i32, %c0_i32_0 : i32, i32
  }
  func.func @transform_2(%arg0: i32) -> (i32, i32) {
    %c0_i32 = arith.constant 0 : i32
    %c0_i32_0 = arith.constant 0 : i32
    %c0_i32_1 = arith.constant 0 : i32
    return %c0_i32, %c0_i32_0 : i32, i32
  }
  func.func @transform_3(%arg0: i32) -> (i32, i32) {
    %c0_i32 = arith.constant 0 : i32
    %c0_i32_0 = arith.constant 0 : i32
    %c0_i32_1 = arith.constant 0 : i32
    return %c0_i32, %c0_i32_0 : i32, i32
  }
  func.func @transform_4(%arg0: i32) -> (i32, i32) {
    %c0_i32 = arith.constant 0 : i32
    %c0_i32_0 = arith.constant 0 : i32
    %c0_i32_1 = arith.constant 0 : i32
    return %c0_i32, %c0_i32_0 : i32, i32
  }
  func.func @transform_5(%arg0: i32) -> (i32, i32) {
    %c0_i32 = arith.constant 0 : i32
    %c0_i32_0 = arith.constant 0 : i32
    return %arg0, %c0_i32 : i32, i32
  }
}

</mosaic_0001>

<llo_original>
// kernel: tpu_custom_call.1
$region0: #{tpu_custom_call.1}
  #allocation0 [shape = 'u32[]', space=smem, size = 0x4, offset = 0x4, fixed_abs, tag = 'smem constant byte address 0x4 - core index']
  #allocation1 [shape = 'u32[144,128]{1,0:T(1,128)}', space=vmem, size = 0x12000, scoped, tag = 'internal scratch']
  %s0 = inlined_call_operand.hbm [shape: bf16[16,512], index: 0, kind: input, shape index: {}]
  %s1 = inlined_call_operand.hbm [shape: bf16[512,256], index: 1, kind: input, shape index: {}]
  %s2 = inlined_call_operand.vmem [shape: f32[1,256], index: 2, kind: input, shape index: {}]
  %s3 = inlined_call_operand.hbm [shape: bf16[256,128], index: 3, kind: input, shape index: {}]
  %s4 = inlined_call_operand.vmem [shape: f32[1,128], index: 4, kind: input, shape index: {}]
  %s5 = inlined_call_operand.hbm [shape: f32[16,128], index: 5, kind: output, shape index: {}]
  %s6 = sld [smem:[#allocation0]]
  $region42: #{tpu_custom_call.1} parent=0
    _
  %s8 = ssub.s32 1, %s6
  %s9 = scalar_select 0, %s8, %s6
  $region1: #{tpu_custom_call.1} parent=0
    #allocation2 [shape = 'u8[16384]{0}', space=vmem, size = 0x4000, scoped, tag = 'input window, operand 0, single buffered']
    #allocation3 [shape = 's32[1]{0}', space=sflag, size = 0x4, scoped, tag = 'scoped memory for tpu_custom_call.1']
    #allocation4 [shape = 's32[1]{0}', space=sflag, size = 0x4, scoped, tag = 'scoped memory for tpu_custom_call.1']
    #allocation5 [shape = 'u8[262144]{0}', space=vmem, size = 0x40000, scoped, tag = 'input window, operand 1, single buffered']
    #allocation6 [shape = 's32[1]{0}', space=sflag, size = 0x4, scoped, tag = 'scoped memory for tpu_custom_call.1']
    #allocation7 [shape = 'u8[65536]{0}', space=vmem, size = 0x10000, scoped, tag = 'input window, operand 3, single buffered']
    #allocation8 [shape = 'u8[8192]{0}', space=vmem, size = 0x2000, scoped, tag = 'output window, operand 0, single buffered']
    %10 = vsyncpa [#allocation3], 0
    %11 = vsyncpa [#allocation6], 0
    %12 = vsyncpa [#allocation4], 0
    // Predicated region
    $region2: #{tpu_custom_call.1} parent=1 // pred_check
      _
    $region3: #{tpu_custom_call.1} parent=1 // pred_check_branch
      %14 = sbr.rel (0) target = $region5
    $region4: #{tpu_custom_call.1} parent=1 // pred_region
      %s16 = ssub.s32 512, 512
      %17 = vsyncadd [#allocation3], %s16
      %s18 = sshll.u32 [#allocation2], 4
      %s19 = int_to_ptr.vmem [resolvable:$true] %s18
      %24 = dma.hbm_to_vmem [thread:$0]  %s0, 512, %s19, [#allocation3], 256, 256, 16
    $region5: #{tpu_custom_call.1} parent=1 // pred_fallthru
      _
    // Predicated region
    $region6: #{tpu_custom_call.1} parent=1 // pred_check
      _
    $region7: #{tpu_custom_call.1} parent=1 // pred_check_branch
      %26 = sbr.rel (0) target = $region9
    $region8: #{tpu_custom_call.1} parent=1 // pred_region
      %s28 = ssub.s32 8192, 8192
      %29 = vsyncadd [#allocation6], %s28
      %s30 = sshll.u32 [#allocation5], 4
      %s31 = int_to_ptr.vmem [resolvable:$true] %s30
      %36 = dma.hbm_to_vmem [thread:$0]  %s1, 8192, %s31, [#allocation6], 128, 128, 8
    $region9: #{tpu_custom_call.1} parent=1 // pred_fallthru
      _
    // Predicated region
    $region10: #{tpu_custom_call.1} parent=1 // pred_check
      _
    $region11: #{tpu_custom_call.1} parent=1 // pred_check_branch
      %38 = sbr.rel (0) target = $region13
    $region12: #{tpu_custom_call.1} parent=1 // pred_region
      _
    $region13: #{tpu_custom_call.1} parent=1 // pred_fallthru
      _
    // Predicated region
    $region14: #{tpu_custom_call.1} parent=1 // pred_check
      _
    $region15: #{tpu_custom_call.1} parent=1 // pred_check_branch
      %40 = sbr.rel (0) target = $region17
    $region16: #{tpu_custom_call.1} parent=1 // pred_region
      %s42 = ssub.s32 2048, 2048
      %43 = vsyncadd [#allocation6], %s42
      %s44 = sshll.u32 [#allocation7], 4
      %s45 = int_to_ptr.vmem [resolvable:$true] %s44
      %50 = dma.hbm_to_vmem [thread:$0]  %s3, 2048, %s45, [#allocation6], 64, 64, 4
    $region17: #{tpu_custom_call.1} parent=1 // pred_fallthru
      _
    // Predicated region
    $region18: #{tpu_custom_call.1} parent=1 // pred_check
      _
    $region19: #{tpu_custom_call.1} parent=1 // pred_check_branch
      %52 = sbr.rel (0) target = $region21
    $region20: #{tpu_custom_call.1} parent=1 // pred_region
      _
    $region21: #{tpu_custom_call.1} parent=1 // pred_fallthru
      _
    // Predicated region
    $region22: #{tpu_custom_call.1} parent=1 // pred_check
      _
    $region23: #{tpu_custom_call.1} parent=1 // pred_check_branch
      %54 = sbr.rel (0) target = $region25
    $region24: #{tpu_custom_call.1} parent=1 // pred_region
      %55 = dma.done [#allocation3], 512
    $region25: #{tpu_custom_call.1} parent=1 // pred_fallthru
      _
    // Predicated region
    $region26: #{tpu_custom_call.1} parent=1 // pred_check
      _
    $region27: #{tpu_custom_call.1} parent=1 // pred_check_branch
      %57 = sbr.rel (0) target = $region29
    $region28: #{tpu_custom_call.1} parent=1 // pred_region
      %58 = dma.done [#allocation6], 8192
    $region29: #{tpu_custom_call.1} parent=1 // pred_fallthru
      _
    // Predicated region
    $region30: #{tpu_custom_call.1} parent=1 // pred_check
      _
    $region31: #{tpu_custom_call.1} parent=1 // pred_check_branch
      %60 = sbr.rel (0) target = $region33
    $region32: #{tpu_custom_call.1} parent=1 // pred_region
      %61 = dma.done [#allocation6], 2048
    $region33: #{tpu_custom_call.1} parent=1 // pred_fallthru
      _
    %v63 = vld [vmem:[#allocation2] sm:$0xff]
    %v64 = vld [vmem:[#allocation2 + $0x8] sm:$0xff]
    %v65 = vld [vmem:[#allocation2 + $0x10] sm:$0xff]
    %v66 = vld [vmem:[#allocation2 + $0x18] sm:$0xff]
    %v67 = vld [vmem:[#allocation5] sm:$0xff]
    %v68 = vld [vmem:[#allocation5 + $0x8] sm:$0xff]
    %v69 = vld [vmem:[#allocation5 + $0x10] sm:$0xff]
    %v70 = vld [vmem:[#allocation5 + $0x18] sm:$0xff]
    %v71 = vld [vmem:[#allocation5 + $0x20] sm:$0xff]
    %v72 = vld [vmem:[#allocation5 + $0x28] sm:$0xff]
    %v73 = vld [vmem:[#allocation5 + $0x30] sm:$0xff]
    %v74 = vld [vmem:[#allocation5 + $0x38] sm:$0xff]
    %v75 = vld [vmem:[#allocation5 + $0x40] sm:$0xff]
    %v76 = vld [vmem:[#allocation5 + $0x48] sm:$0xff]
    %v77 = vld [vmem:[#allocation5 + $0x50] sm:$0xff]
    %v78 = vld [vmem:[#allocation5 + $0x58] sm:$0xff]
    %v79 = vld [vmem:[#allocation5 + $0x60] sm:$0xff]
    %v80 = vld [vmem:[#allocation5 + $0x68] sm:$0xff]
    %v81 = vld [vmem:[#allocation5 + $0x70] sm:$0xff]
    %v82 = vld [vmem:[#allocation5 + $0x78] sm:$0xff]
    %v83 = vld [vmem:[#allocation5 + $0x80] sm:$0xff]
    %v84 = vld [vmem:[#allocation5 + $0x88] sm:$0xff]
    %v85 = vld [vmem:[#allocation5 + $0x90] sm:$0xff]
    %v86 = vld [vmem:[#allocation5 + $0x98] sm:$0xff]
    %v87 = vld [vmem:[#allocation5 + $0xa0] sm:$0xff]
    %v88 = vld [vmem:[#allocation5 + $0xa8] sm:$0xff]
    %v89 = vld [vmem:[#allocation5 + $0xb0] sm:$0xff]
    %v90 = vld [vmem:[#allocation5 + $0xb8] sm:$0xff]
    %v91 = vld [vmem:[#allocation5 + $0xc0] sm:$0xff]
    %v92 = vld [vmem:[#allocation5 + $0xc8] sm:$0xff]
    %v93 = vld [vmem:[#allocation5 + $0xd0] sm:$0xff]
    %v94 = vld [vmem:[#allocation5 + $0xd8] sm:$0xff]
    %v95 = vld [vmem:[#allocation5 + $0xe0] sm:$0xff]
    %v96 = vld [vmem:[#allocation5 + $0xe8] sm:$0xff]
    %v97 = vld [vmem:[#allocation5 + $0xf0] sm:$0xff]
    %v98 = vld [vmem:[#allocation5 + $0xf8] sm:$0xff]
    %v99 = vld [vmem:[#allocation5 + $0x100] sm:$0xff]
    %v100 = vld [vmem:[#allocation5 + $0x108] sm:$0xff]
    %v101 = vld [vmem:[#allocation5 + $0x110] sm:$0xff]
    %v102 = vld [vmem:[#allocation5 + $0x118] sm:$0xff]
    %v103 = vld [vmem:[#allocation5 + $0x120] sm:$0xff]
    %v104 = vld [vmem:[#allocation5 + $0x128] sm:$0xff]
    %v105 = vld [vmem:[#allocation5 + $0x130] sm:$0xff]
    %v106 = vld [vmem:[#allocation5 + $0x138] sm:$0xff]
    %v107 = vld [vmem:[#allocation5 + $0x140] sm:$0xff]
    %v108 = vld [vmem:[#allocation5 + $0x148] sm:$0xff]
    %v109 = vld [vmem:[#allocation5 + $0x150] sm:$0xff]
    %v110 = vld [vmem:[#allocation5 + $0x158] sm:$0xff]
    %v111 = vld [vmem:[#allocation5 + $0x160] sm:$0xff]
    %v112 = vld [vmem:[#allocation5 + $0x168] sm:$0xff]
    %v113 = vld [vmem:[#allocation5 + $0x170] sm:$0xff]
    %v114 = vld [vmem:[#allocation5 + $0x178] sm:$0xff]
    %v115 = vld [vmem:[#allocation5 + $0x180] sm:$0xff]
    %v116 = vld [vmem:[#allocation5 + $0x188] sm:$0xff]
    %v117 = vld [vmem:[#allocation5 + $0x190] sm:$0xff]
    %v118 = vld [vmem:[#allocation5 + $0x198] sm:$0xff]
    %v119 = vld [vmem:[#allocation5 + $0x1a0] sm:$0xff]
    %v120 = vld [vmem:[#allocation5 + $0x1a8] sm:$0xff]
    %v121 = vld [vmem:[#allocation5 + $0x1b0] sm:$0xff]
    %v122 = vld [vmem:[#allocation5 + $0x1b8] sm:$0xff]
    %v123 = vld [vmem:[#allocation5 + $0x1c0] sm:$0xff]
    %v124 = vld [vmem:[#allocation5 + $0x1c8] sm:$0xff]
    %v125 = vld [vmem:[#allocation5 + $0x1d0] sm:$0xff]
    %v126 = vld [vmem:[#allocation5 + $0x1d8] sm:$0xff]
    %v127 = vld [vmem:[#allocation5 + $0x1e0] sm:$0xff]
    %v128 = vld [vmem:[#allocation5 + $0x1e8] sm:$0xff]
    %v129 = vld [vmem:[#allocation5 + $0x1f0] sm:$0xff]
    %v130 = vld [vmem:[#allocation5 + $0x1f8] sm:$0xff]
    %v131 = vld [vmem:[%s2] sm:$0x3]
    %v133 = vlaneseq
    %v134 = vshrl.u32 %v133, 7
    %v135 = vsub.s32 0, %v134
    %v136 = vrot.slane %v131, %v135
    %v137 = vlaneseq
    %v138 = vshrl.u32 %v137, 7
    %v139 = vsub.s32 1, %v138
    %v140 = vrot.slane %v131, %v139
    %v147 = vunpack.c.l.b16 %v63
    %v148 = vunpack.c.h.b16 %v63
    %v149 = vunpack.c.l.b16 %v64
    %v150 = vunpack.c.h.b16 %v64
    %v151 = vunpack.c.l.b16 %v65
    %v152 = vunpack.c.h.b16 %v65
    %v153 = vunpack.c.l.b16 %v66
    %v154 = vunpack.c.h.b16 %v66
    %v155 = vpack.c.b16 %v151, %v147
    %v156 = vpack.c.b16 %v152, %v148
    %v157 = vpack.c.b16 %v153, %v149
    %v158 = vpack.c.b16 %v154, %v150
    %v227 = vunpack.c.l.b16 %v67
    %v228 = vunpack.c.h.b16 %v67
    %v229 = vunpack.c.l.b16 %v68
    %v230 = vunpack.c.h.b16 %v68
    %v231 = vunpack.c.l.b16 %v69
    %v232 = vunpack.c.h.b16 %v69
    %v233 = vunpack.c.l.b16 %v70
    %v234 = vunpack.c.h.b16 %v70
    %v235 = vunpack.c.l.b16 %v71
    %v236 = vunpack.c.h.b16 %v71
    %v237 = vunpack.c.l.b16 %v72
    %v238 = vunpack.c.h.b16 %v72
    %v239 = vunpack.c.l.b16 %v73
    %v240 = vunpack.c.h.b16 %v73
    %v241 = vunpack.c.l.b16 %v74
    %v242 = vunpack.c.h.b16 %v74
    %v243 = vunpack.c.l.b16 %v75
    %v244 = vunpack.c.h.b16 %v75
    %v245 = vunpack.c.l.b16 %v76
    %v246 = vunpack.c.h.b16 %v76
    %v247 = vunpack.c.l.b16 %v77
    %v248 = vunpack.c.h.b16 %v77
    %v249 = vunpack.c.l.b16 %v78
    %v250 = vunpack.c.h.b16 %v78
    %v251 = vunpack.c.l.b16 %v79
    %v252 = vunpack.c.h.b16 %v79
    %v253 = vunpack.c.l.b16 %v80
    %v254 = vunpack.c.h.b16 %v80
    %v255 = vunpack.c.l.b16 %v81
    %v256 = vunpack.c.h.b16 %v81
    %v257 = vunpack.c.l.b16 %v82
    %v258 = vunpack.c.h.b16 %v82
    %v259 = vunpack.c.l.b16 %v83
    %v260 = vunpack.c.h.b16 %v83
    %v261 = vunpack.c.l.b16 %v84
    %v262 = vunpack.c.h.b16 %v84
    %v263 = vunpack.c.l.b16 %v85
    %v264 = vunpack.c.h.b16 %v85
    %v265 = vunpack.c.l.b16 %v86
    %v266 = vunpack.c.h.b16 %v86
    %v267 = vunpack.c.l.b16 %v87
    %v268 = vunpack.c.h.b16 %v87
    %v269 = vunpack.c.l.b16 %v88
    %v270 = vunpack.c.h.b16 %v88
    %v271 = vunpack.c.l.b16 %v89
    %v272 = vunpack.c.h.b16 %v89
    %v273 = vunpack.c.l.b16 %v90
    %v274 = vunpack.c.h.b16 %v90
    %v275 = vunpack.c.l.b16 %v91
    %v276 = vunpack.c.h.b16 %v91
    %v277 = vunpack.c.l.b16 %v92
    %v278 = vunpack.c.h.b16 %v92
    %v279 = vunpack.c.l.b16 %v93
    %v280 = vunpack.c.h.b16 %v93
    %v281 = vunpack.c.l.b16 %v94
    %v282 = vunpack.c.h.b16 %v94
    %v283 = vunpack.c.l.b16 %v95
    %v284 = vunpack.c.h.b16 %v95
    %v285 = vunpack.c.l.b16 %v96
    %v286 = vunpack.c.h.b16 %v96
    %v287 = vunpack.c.l.b16 %v97
    %v288 = vunpack.c.h.b16 %v97
    %v289 = vunpack.c.l.b16 %v98
    %v290 = vunpack.c.h.b16 %v98
    %v291 = vunpack.c.l.b16 %v99
    %v292 = vunpack.c.h.b16 %v99
    %v293 = vunpack.c.l.b16 %v100
    %v294 = vunpack.c.h.b16 %v100
    %v295 = vunpack.c.l.b16 %v101
    %v296 = vunpack.c.h.b16 %v101
    %v297 = vunpack.c.l.b16 %v102
    %v298 = vunpack.c.h.b16 %v102
    %v299 = vunpack.c.l.b16 %v103
    %v300 = vunpack.c.h.b16 %v103
    %v301 = vunpack.c.l.b16 %v104
    %v302 = vunpack.c.h.b16 %v104
    %v303 = vunpack.c.l.b16 %v105
    %v304 = vunpack.c.h.b16 %v105
    %v305 = vunpack.c.l.b16 %v106
    %v306 = vunpack.c.h.b16 %v106
    %v307 = vunpack.c.l.b16 %v107
    %v308 = vunpack.c.h.b16 %v107
    %v309 = vunpack.c.l.b16 %v108
    %v310 = vunpack.c.h.b16 %v108
    %v311 = vunpack.c.l.b16 %v109
    %v312 = vunpack.c.h.b16 %v109
    %v313 = vunpack.c.l.b16 %v110
    %v314 = vunpack.c.h.b16 %v110
    %v315 = vunpack.c.l.b16 %v111
    %v316 = vunpack.c.h.b16 %v111
    %v317 = vunpack.c.l.b16 %v112
    %v318 = vunpack.c.h.b16 %v112
    %v319 = vunpack.c.l.b16 %v113
    %v320 = vunpack.c.h.b16 %v113
    %v321 = vunpack.c.l.b16 %v114
    %v322 = vunpack.c.h.b16 %v114
    %v323 = vunpack.c.l.b16 %v115
    %v324 = vunpack.c.h.b16 %v115
    %v325 = vunpack.c.l.b16 %v116
    %v326 = vunpack.c.h.b16 %v116
    %v327 = vunpack.c.l.b16 %v117
    %v328 = vunpack.c.h.b16 %v117
    %v329 = vunpack.c.l.b16 %v118
    %v330 = vunpack.c.h.b16 %v118
    %v331 = vunpack.c.l.b16 %v119
    %v332 = vunpack.c.h.b16 %v119
    %v333 = vunpack.c.l.b16 %v120
    %v334 = vunpack.c.h.b16 %v120
    %v335 = vunpack.c.l.b16 %v121
    %v336 = vunpack.c.h.b16 %v121
    %v337 = vunpack.c.l.b16 %v122
    %v338 = vunpack.c.h.b16 %v122
    %v339 = vunpack.c.l.b16 %v123
    %v340 = vunpack.c.h.b16 %v123
    %v341 = vunpack.c.l.b16 %v124
    %v342 = vunpack.c.h.b16 %v124
    %v343 = vunpack.c.l.b16 %v125
    %v344 = vunpack.c.h.b16 %v125
    %v345 = vunpack.c.l.b16 %v126
    %v346 = vunpack.c.h.b16 %v126
    %v347 = vunpack.c.l.b16 %v127
    %v348 = vunpack.c.h.b16 %v127
    %v349 = vunpack.c.l.b16 %v128
    %v350 = vunpack.c.h.b16 %v128
    %v351 = vunpack.c.l.b16 %v129
    %v352 = vunpack.c.h.b16 %v129
    %v353 = vunpack.c.l.b16 %v130
    %v354 = vunpack.c.h.b16 %v130
    %v355 = vpack.c.b16 %v229, %v227
    %v356 = vpack.c.b16 %v230, %v228
    %v357 = vpack.c.b16 %v233, %v231
    %v358 = vpack.c.b16 %v234, %v232
    %v359 = vpack.c.b16 %v237, %v235
    %v360 = vpack.c.b16 %v238, %v236
    %v361 = vpack.c.b16 %v241, %v239
    %v362 = vpack.c.b16 %v242, %v240
    %v363 = vpack.c.b16 %v245, %v243
    %v364 = vpack.c.b16 %v246, %v244
    %v365 = vpack.c.b16 %v249, %v247
    %v366 = vpack.c.b16 %v250, %v248
    %v367 = vpack.c.b16 %v253, %v251
    %v368 = vpack.c.b16 %v254, %v252
    %v369 = vpack.c.b16 %v257, %v255
    %v370 = vpack.c.b16 %v258, %v256
    %v371 = vpack.c.b16 %v261, %v259
    %v372 = vpack.c.b16 %v262, %v260
    %v373 = vpack.c.b16 %v265, %v263
    %v374 = vpack.c.b16 %v266, %v264
    %v375 = vpack.c.b16 %v269, %v267
    %v376 = vpack.c.b16 %v270, %v268
    %v377 = vpack.c.b16 %v273, %v271
    %v378 = vpack.c.b16 %v274, %v272
    %v379 = vpack.c.b16 %v277, %v275
    %v380 = vpack.c.b16 %v278, %v276
    %v381 = vpack.c.b16 %v281, %v279
    %v382 = vpack.c.b16 %v282, %v280
    %v383 = vpack.c.b16 %v285, %v283
    %v384 = vpack.c.b16 %v286, %v284
    %v385 = vpack.c.b16 %v289, %v287
    %v386 = vpack.c.b16 %v290, %v288
    %v387 = vpack.c.b16 %v293, %v291
    %v388 = vpack.c.b16 %v294, %v292
    %v389 = vpack.c.b16 %v297, %v295
    %v390 = vpack.c.b16 %v298, %v296
    %v391 = vpack.c.b16 %v301, %v299
    %v392 = vpack.c.b16 %v302, %v300
    %v393 = vpack.c.b16 %v305, %v303
    %v394 = vpack.c.b16 %v306, %v304
    %v395 = vpack.c.b16 %v309, %v307
    %v396 = vpack.c.b16 %v310, %v308
    %v397 = vpack.c.b16 %v313, %v311
    %v398 = vpack.c.b16 %v314, %v312
    %v399 = vpack.c.b16 %v317, %v315
    %v400 = vpack.c.b16 %v318, %v316
    %v401 = vpack.c.b16 %v321, %v319
    %v402 = vpack.c.b16 %v322, %v320
    %v403 = vpack.c.b16 %v325, %v323
    %v404 = vpack.c.b16 %v326, %v324
    %v405 = vpack.c.b16 %v329, %v327
    %v406 = vpack.c.b16 %v330, %v328
    %v407 = vpack.c.b16 %v333, %v331
    %v408 = vpack.c.b16 %v334, %v332
    %v409 = vpack.c.b16 %v337, %v335
    %v410 = vpack.c.b16 %v338, %v336
    %v411 = vpack.c.b16 %v341, %v339
    %v412 = vpack.c.b16 %v342, %v340
    %v413 = vpack.c.b16 %v345, %v343
    %v414 = vpack.c.b16 %v346, %v344
    %v415 = vpack.c.b16 %v349, %v347
    %v416 = vpack.c.b16 %v350, %v348
    %v417 = vpack.c.b16 %v353, %v351
    %v418 = vpack.c.b16 %v354, %v352
    %483 = vmatprep.subr.bf16.mxu0 %v370
    %484 = vmatpush1.bf16.msra.mxu0 %v369
    %485 = vmatprep.subr.bf16.mxu0 %v368
    %486 = vmatpush1.bf16.msra.mxu0 %v367
    %487 = vmatprep.subr.bf16.mxu0 %v366
    %488 = vmatpush1.bf16.msra.mxu0 %v365
    %489 = vmatprep.subr.bf16.mxu0 %v364
    %490 = vmatpush1.bf16.msra.mxu0 %v363
    %491 = vmatprep.subr.bf16.mxu0 %v362
    %492 = vmatpush1.bf16.msra.mxu0 %v361
    %493 = vmatprep.subr.bf16.mxu0 %v360
    %494 = vmatpush1.bf16.msra.mxu0 %v359
    %495 = vmatprep.subr.bf16.mxu0 %v358
    %496 = vmatpush1.bf16.msra.mxu0 %v357
    %497 = vmatprep.subr.bf16.mxu0 %v356
    %498 = vmatpush1.bf16.msra.mxu0 %v355
    %499 = vmatprep.subr.bf16.mxu0 %v386
    %500 = vmatpush2.bf16.msra.mxu0 %v385
    %501 = vmatprep.subr.bf16.mxu0 %v384
    %502 = vmatpush2.bf16.msra.mxu0 %v383
    %503 = vmatprep.subr.bf16.mxu0 %v382
    %504 = vmatpush2.bf16.msra.mxu0 %v381
    %505 = vmatprep.subr.bf16.mxu0 %v380
    %506 = vmatpush2.bf16.msra.mxu0 %v379
    %507 = vmatprep.subr.bf16.mxu0 %v378
    %508 = vmatpush2.bf16.msra.mxu0 %v377
    %509 = vmatprep.subr.bf16.mxu0 %v376
    %510 = vmatpush2.bf16.msra.mxu0 %v375
    %511 = vmatprep.subr.bf16.mxu0 %v374
    %512 = vmatpush2.bf16.msra.mxu0 %v373
    %513 = vmatprep.subr.bf16.mxu0 %v372
    %514 = vmatpush2.bf16.msra.mxu0 %v371
    %515 = vmatprep.mubr.bf16.mxu0 %v156
    %516 = vmatmul.mubr.bf16.gmra.mxu0 %v155
    %v517 = vpop.f32.mrf.mxu0
    %v518 = vadd.f32 %v136, %v517
    %v519 = vpop.f32.mrf.mxu0
    %v520 = vadd.f32 %v140, %v519
    %v521 = vpop.f32.mrf.mxu0
    %v522 = vadd.f32 %v136, %v521
    %v523 = vpop.f32.mrf.mxu0
    %v524 = vadd.f32 %v140, %v523
    %525 = vdwg.mxu0
    %526 = vmatprep.subr.bf16.mxu0 %v402
    %527 = vmatpush1.bf16.msra.mxu0 %v401
    %528 = vmatprep.subr.bf16.mxu0 %v400
    %529 = vmatpush1.bf16.msra.mxu0 %v399
    %530 = vmatprep.subr.bf16.mxu0 %v398
    %531 = vmatpush1.bf16.msra.mxu0 %v397
    %532 = vmatprep.subr.bf16.mxu0 %v396
    %533 = vmatpush1.bf16.msra.mxu0 %v395
    %534 = vmatprep.subr.bf16.mxu0 %v394
    %535 = vmatpush1.bf16.msra.mxu0 %v393
    %536 = vmatprep.subr.bf16.mxu0 %v392
    %537 = vmatpush1.bf16.msra.mxu0 %v391
    %538 = vmatprep.subr.bf16.mxu0 %v390
    %539 = vmatpush1.bf16.msra.mxu0 %v389
    %540 = vmatprep.subr.bf16.mxu0 %v388
    %541 = vmatpush1.bf16.msra.mxu0 %v387
    %542 = vmatprep.subr.bf16.mxu0 %v418
    %543 = vmatpush2.bf16.msra.mxu0 %v417
    %544 = vmatprep.subr.bf16.mxu0 %v416
    %545 = vmatpush2.bf16.msra.mxu0 %v415
    %546 = vmatprep.subr.bf16.mxu0 %v414
    %547 = vmatpush2.bf16.msra.mxu0 %v413
    %548 = vmatprep.subr.bf16.mxu0 %v412
    %549 = vmatpush2.bf16.msra.mxu0 %v411
    %550 = vmatprep.subr.bf16.mxu0 %v410
    %551 = vmatpush2.bf16.msra.mxu0 %v409
    %552 = vmatprep.subr.bf16.mxu0 %v408
    %553 = vmatpush2.bf16.msra.mxu0 %v407
    %554 = vmatprep.subr.bf16.mxu0 %v406
    %555 = vmatpush2.bf16.msra.mxu0 %v405
    %556 = vmatprep.subr.bf16.mxu0 %v404
    %557 = vmatpush2.bf16.msra.mxu0 %v403
    %558 = vmatprep.mubr.bf16.mxu0 %v158
    %559 = vmatmul.mubr.bf16.gmra.mxu0 %v157
    %v560 = vpop.f32.mrf.mxu0
    %v561 = vadd.f32 %v518, %v560
    %v562 = vpop.f32.mrf.mxu0
    %v563 = vadd.f32 %v520, %v562
    %v564 = vpop.f32.mrf.mxu0
    %v565 = vadd.f32 %v522, %v564
    %v566 = vpop.f32.mrf.mxu0
    %v567 = vadd.f32 %v524, %v566
    %568 = vdwg.mxu0
    %v569 = vmax.f32 %v561, 0.0
    %v570 = vmax.f32 %v563, 0.0
    %v571 = vmax.f32 %v565, 0.0
    %v572 = vmax.f32 %v567, 0.0
    %v573 = vpack.c.bf16 %v571, %v569
    %v574 = vpack.c.bf16 %v572, %v570
    %v575 = vld [vmem:[#allocation7] sm:$0xf]
    %v576 = vld [vmem:[#allocation7 + $0x4] sm:$0xf]
    %v577 = vld [vmem:[#allocation7 + $0x8] sm:$0xf]
    %v578 = vld [vmem:[#allocation7 + $0xc] sm:$0xf]
    %v579 = vld [vmem:[#allocation7 + $0x10] sm:$0xf]
    %v580 = vld [vmem:[#allocation7 + $0x14] sm:$0xf]
    %v581 = vld [vmem:[#allocation7 + $0x18] sm:$0xf]
    %v582 = vld [vmem:[#allocation7 + $0x1c] sm:$0xf]
    %v583 = vld [vmem:[#allocation7 + $0x20] sm:$0xf]
    %v584 = vld [vmem:[#allocation7 + $0x24] sm:$0xf]
    %v585 = vld [vmem:[#allocation7 + $0x28] sm:$0xf]
    %v586 = vld [vmem:[#allocation7 + $0x2c] sm:$0xf]
    %v587 = vld [vmem:[#allocation7 + $0x30] sm:$0xf]
    %v588 = vld [vmem:[#allocation7 + $0x34] sm:$0xf]
    %v589 = vld [vmem:[#allocation7 + $0x38] sm:$0xf]
    %v590 = vld [vmem:[#allocation7 + $0x3c] sm:$0xf]
    %v591 = vld [vmem:[#allocation7 + $0x40] sm:$0xf]
    %v592 = vld [vmem:[#allocation7 + $0x44] sm:$0xf]
    %v593 = vld [vmem:[#allocation7 + $0x48] sm:$0xf]
    %v594 = vld [vmem:[#allocation7 + $0x4c] sm:$0xf]
    %v595 = vld [vmem:[#allocation7 + $0x50] sm:$0xf]
    %v596 = vld [vmem:[#allocation7 + $0x54] sm:$0xf]
    %v597 = vld [vmem:[#allocation7 + $0x58] sm:$0xf]
    %v598 = vld [vmem:[#allocation7 + $0x5c] sm:$0xf]
    %v599 = vld [vmem:[#allocation7 + $0x60] sm:$0xf]
    %v600 = vld [vmem:[#allocation7 + $0x64] sm:$0xf]
    %v601 = vld [vmem:[#allocation7 + $0x68] sm:$0xf]
    %v602 = vld [vmem:[#allocation7 + $0x6c] sm:$0xf]
    %v603 = vld [vmem:[#allocation7 + $0x70] sm:$0xf]
    %v604 = vld [vmem:[#allocation7 + $0x74] sm:$0xf]
    %v605 = vld [vmem:[#allocation7 + $0x78] sm:$0xf]
    %v606 = vld [vmem:[#allocation7 + $0x7c] sm:$0xf]
    %v607 = vld [vmem:[%s4] sm:$0x1]
    %v609 = vlaneseq
    %v610 = vshrl.u32 %v609, 7
    %v611 = vsub.s32 0, %v610
    %v612 = vrot.slane %v607, %v611
    %v646 = vunpack.c.l.b16 %v575
    %v647 = vunpack.c.l.b16 %v576
    %v648 = vunpack.c.l.b16 %v577
    %v649 = vunpack.c.l.b16 %v578
    %v650 = vunpack.c.l.b16 %v579
    %v651 = vunpack.c.l.b16 %v580
    %v652 = vunpack.c.l.b16 %v581
    %v653 = vunpack.c.l.b16 %v582
    %v654 = vunpack.c.l.b16 %v583
    %v655 = vunpack.c.l.b16 %v584
    %v656 = vunpack.c.l.b16 %v585
    %v657 = vunpack.c.l.b16 %v586
    %v658 = vunpack.c.l.b16 %v587
    %v659 = vunpack.c.l.b16 %v588
    %v660 = vunpack.c.l.b16 %v589
    %v661 = vunpack.c.l.b16 %v590
    %v662 = vunpack.c.l.b16 %v591
    %v663 = vunpack.c.l.b16 %v592
    %v664 = vunpack.c.l.b16 %v593
    %v665 = vunpack.c.l.b16 %v594
    %v666 = vunpack.c.l.b16 %v595
    %v667 = vunpack.c.l.b16 %v596
    %v668 = vunpack.c.l.b16 %v597
    %v669 = vunpack.c.l.b16 %v598
    %v670 = vunpack.c.l.b16 %v599
    %v671 = vunpack.c.l.b16 %v600
    %v672 = vunpack.c.l.b16 %v601
    %v673 = vunpack.c.l.b16 %v602
    %v674 = vunpack.c.l.b16 %v603
    %v675 = vunpack.c.l.b16 %v604
    %v676 = vunpack.c.l.b16 %v605
    %v677 = vunpack.c.l.b16 %v606
    %v678 = vpack.c.b16 %v647, %v646
    %v679 = vpack.c.b16 %v649, %v648
    %v680 = vpack.c.b16 %v651, %v650
    %v681 = vpack.c.b16 %v653, %v652
    %v682 = vpack.c.b16 %v655, %v654
    %v683 = vpack.c.b16 %v657, %v656
    %v684 = vpack.c.b16 %v659, %v658
    %v685 = vpack.c.b16 %v661, %v660
    %v686 = vpack.c.b16 %v663, %v662
    %v687 = vpack.c.b16 %v665, %v664
    %v688 = vpack.c.b16 %v667, %v666
    %v689 = vpack.c.b16 %v669, %v668
    %v690 = vpack.c.b16 %v671, %v670
    %v691 = vpack.c.b16 %v673, %v672
    %v692 = vpack.c.b16 %v675, %v674
    %v693 = vpack.c.b16 %v677, %v676
    %710 = vmatprep.subr.bf16.mxu0 0
    %711 = vmatpush1.bf16.msra.mxu0 %v685
    %712 = vmatprep.subr.bf16.mxu0 0
    %713 = vmatpush1.bf16.msra.mxu0 %v684
    %714 = vmatprep.subr.bf16.mxu0 0
    %715 = vmatpush1.bf16.msra.mxu0 %v683
    %716 = vmatprep.subr.bf16.mxu0 0
    %717 = vmatpush1.bf16.msra.mxu0 %v682
    %718 = vmatprep.subr.bf16.mxu0 0
    %719 = vmatpush1.bf16.msra.mxu0 %v681
    %720 = vmatprep.subr.bf16.mxu0 0
    %721 = vmatpush1.bf16.msra.mxu0 %v680
    %722 = vmatprep.subr.bf16.mxu0 0
    %723 = vmatpush1.bf16.msra.mxu0 %v679
    %724 = vmatprep.subr.bf16.mxu0 0
    %725 = vmatpush1.bf16.msra.mxu0 %v678
    %726 = vmatprep.subr.bf16.mxu0 0
    %727 = vmatpush2.bf16.msra.mxu0 %v693
    %728 = vmatprep.subr.bf16.mxu0 0
    %729 = vmatpush2.bf16.msra.mxu0 %v692
    %730 = vmatprep.subr.bf16.mxu0 0
    %731 = vmatpush2.bf16.msra.mxu0 %v691
    %732 = vmatprep.subr.bf16.mxu0 0
    %733 = vmatpush2.bf16.msra.mxu0 %v690
    %734 = vmatprep.subr.bf16.mxu0 0
    %735 = vmatpush2.bf16.msra.mxu0 %v689
    %736 = vmatprep.subr.bf16.mxu0 0
    %737 = vmatpush2.bf16.msra.mxu0 %v688
    %738 = vmatprep.subr.bf16.mxu0 0
    %739 = vmatpush2.bf16.msra.mxu0 %v687
    %740 = vmatprep.subr.bf16.mxu0 0
    %741 = vmatpush2.bf16.msra.mxu0 %v686
    %742 = vmatprep.mubr.bf16.mxu0 %v574
    %743 = vmatmul.mubr.bf16.gmra.mxu0 %v573
    %v744 = vpop.f32.mrf.mxu0
    %v745 = vadd.f32 %v612, %v744
    %v746 = vpop.f32.mrf.mxu0
    %v747 = vpop.f32.mrf.mxu0
    %v748 = vadd.f32 %v612, %v747
    %v749 = vpop.f32.mrf.mxu0
    %750 = vdwg.mxu0
    %751 = vst [vmem:[#allocation8] sm:$0xff] %v745
    %752 = vst [vmem:[#allocation8 + $0x8] sm:$0xff] %v748
    // Predicated region
    $region34: #{tpu_custom_call.1} parent=1 // pred_check
      _
    $region35: #{tpu_custom_call.1} parent=1 // pred_check_branch
      %754 = sbr.rel (0) target = $region37
    $region36: #{tpu_custom_call.1} parent=1 // pred_region
      %s756 = ssub.s32 256, 256
      %757 = vsyncadd [#allocation4], %s756
      %s758 = sshll.u32 [#allocation8], 4
      %s759 = int_to_ptr.vmem [resolvable:$true] %s758
      %764 = dma.vmem_to_hbm [thread:$0]  %s759, 256, %s5, [#allocation4], 128, 128, 8
    $region37: #{tpu_custom_call.1} parent=1 // pred_fallthru
      _
    // Predicated region
    $region38: #{tpu_custom_call.1} parent=1 // pred_check
      _
    $region39: #{tpu_custom_call.1} parent=1 // pred_check_branch
      %766 = sbr.rel (0) target = $region41
    $region40: #{tpu_custom_call.1} parent=1 // pred_region
      %767 = dma.done [#allocation4], 256
    $region41: #{tpu_custom_call.1} parent=1 // pred_fallthru
      _
    %768 = vsyncpa [#allocation3], 1
    %769 = vsyncpa [#allocation6], 1
    %770 = vsyncpa [#allocation4], 1

// kernel: tpu_custom_call.1
$region0: #{tpu_custom_call.1}
  #allocation0 [shape = 'u32[]', space=smem, size = 0x4, offset = 0x4, fixed_abs, tag = 'smem constant byte address 0x4 - core index']
  #allocation1 [shape = 'u32[144,128]{1,0:T(1,128)}', space=vmem, size = 0x12000, scoped, tag = 'internal scratch']
  %s0 = inlined_call_operand.hbm [shape: bf16[16,512], index: 0, kind: input, shape index: {}]
  %s1 = inlined_call_operand.hbm [shape: bf16[512,256], index: 1, kind: input, shape index: {}]
  %s2 = inlined_call_operand.vmem [shape: f32[1,256], index: 2, kind: input, shape index: {}]
  %s3 = inlined_call_operand.hbm [shape: bf16[256,128], index: 3, kind: input, shape index: {}]
  %s4 = inlined_call_operand.vmem [shape: f32[1,128], index: 4, kind: input, shape index: {}]
  %s5 = inlined_call_operand.hbm [shape: f32[16,128], index: 5, kind: output, shape index: {}]
  %s6 = sld [smem:[#allocation0]]
  $region42: #{tpu_custom_call.1} parent=0
    _
  %s8 = ssub.s32 1, %s6
  %s9 = scalar_select 0, %s8, %s6
  $region1: #{tpu_custom_call.1} parent=0
    #allocation2 [shape = 'u8[16384]{0}', space=vmem, size = 0x4000, scoped, tag = 'input window, operand 0, single buffered']
    #allocation3 [shape = 's32[1]{0}', space=sflag, size = 0x4, scoped, tag = 'scoped memory for tpu_custom_call.1']
    #allocation4 [shape = 's32[1]{0}', space=sflag, size = 0x4, scoped, tag = 'scoped memory for tpu_custom_call.1']
    #allocation5 [shape = 'u8[262144]{0}', space=vmem, size = 0x40000, scoped, tag = 'input window, operand 1, single buffered']
    #allocation6 [shape = 's32[1]{0}', space=sflag, size = 0x4, scoped, tag = 'scoped memory for tpu_custom_call.1']
    #allocation7 [shape = 'u8[65536]{0}', space=vmem, size = 0x10000, scoped, tag = 'input window, operand 3, single buffered']
    #allocation8 [shape = 'u8[8192]{0}', space=vmem, size = 0x2000, scoped, tag = 'output window, operand 0, single buffered']
    %10 = vsyncpa [#allocation3], 0
    %11 = vsyncpa [#allocation6], 0
    %12 = vsyncpa [#allocation4], 0
    // Predicated region
    $region2: #{tpu_custom_call.1} parent=1 // pred_check
      _
    $region3: #{tpu_custom_call.1} parent=1 // pred_check_branch
      %14 = sbr.rel (0) target = $region5
    $region4: #{tpu_custom_call.1} parent=1 // pred_region
      %s16 = ssub.s32 512, 512
      %17 = vsyncadd [#allocation3], %s16
      %s18 = sshll.u32 [#allocation2], 4
      %s19 = int_to_ptr.vmem [resolvable:$true] %s18
      %24 = dma.hbm_to_vmem [thread:$0]  %s0, 512, %s19, [#allocation3], 256, 256, 16
    $region5: #{tpu_custom_call.1} parent=1 // pred_fallthru
      _
    // Predicated region
    $region6: #{tpu_custom_call.1} parent=1 // pred_check
      _
    $region7: #{tpu_custom_call.1} parent=1 // pred_check_branch
      %26 = sbr.rel (0) target = $region9
    $region8: #{tpu_custom_call.1} parent=1 // pred_region
      %s28 = ssub.s32 8192, 8192
      %29 = vsyncadd [#allocation6], %s28
      %s30 = sshll.u32 [#allocation5], 4
      %s31 = int_to_ptr.vmem [resolvable:$true] %s30
      %36 = dma.hbm_to_vmem [thread:$0]  %s1, 8192, %s31, [#allocation6], 128, 128, 8
    $region9: #{tpu_custom_call.1} parent=1 // pred_fallthru
      _
    // Predicated region
    $region10: #{tpu_custom_call.1} parent=1 // pred_check
      _
    $region11: #{tpu_custom_call.1} parent=1 // pred_check_branch
      %38 = sbr.rel (0) target = $region13
    $region12: #{tpu_custom_call.1} parent=1 // pred_region
      _
    $region13: #{tpu_custom_call.1} parent=1 // pred_fallthru
      _
    // Predicated region
    $region14: #{tpu_custom_call.1} parent=1 // pred_check
      _
    $region15: #{tpu_custom_call.1} parent=1 // pred_check_branch
      %40 = sbr.rel (0) target = $region17
    $region16: #{tpu_custom_call.1} parent=1 // pred_region
      %s42 = ssub.s32 2048, 2048
      %43 = vsyncadd [#allocation6], %s42
      %s44 = sshll.u32 [#allocation7], 4
      %s45 = int_to_ptr.vmem [resolvable:$true] %s44
      %50 = dma.hbm_to_vmem [thread:$0]  %s3, 2048, %s45, [#allocation6], 64, 64, 4
    $region17: #{tpu_custom_call.1} parent=1 // pred_fallthru
      _
    // Predicated region
    $region18: #{tpu_custom_call.1} parent=1 // pred_check
      _
    $region19: #{tpu_custom_call.1} parent=1 // pred_check_branch
      %52 = sbr.rel (0) target = $region21
    $region20: #{tpu_custom_call.1} parent=1 // pred_region
      _
    $region21: #{tpu_custom_call.1} parent=1 // pred_fallthru
      _
    // Predicated region
    $region22: #{tpu_custom_call.1} parent=1 // pred_check
      _
    $region23: #{tpu_custom_call.1} parent=1 // pred_check_branch
      %54 = sbr.rel (0) target = $region25
    $region24: #{tpu_custom_call.1} parent=1 // pred_region
      %55 = dma.done [#allocation3], 512
    $region25: #{tpu_custom_call.1} parent=1 // pred_fallthru
      _
    // Predicated region
    $region26: #{tpu_custom_call.1} parent=1 // pred_check
      _
    $region27: #{tpu_custom_call.1} parent=1 // pred_check_branch
      %57 = sbr.rel (0) target = $region29
    $region28: #{tpu_custom_call.1} parent=1 // pred_region
      %58 = dma.done [#allocation6], 8192
    $region29: #{tpu_custom_call.1} parent=1 // pred_fallthru
      _
    // Predicated region
    $region30: #{tpu_custom_call.1} parent=1 // pred_check
      _
    $region31: #{tpu_custom_call.1} parent=1 // pred_check_branch
      %60 = sbr.rel (0) target = $region33
    $region32: #{tpu_custom_call.1} parent=1 // pred_region
      %61 = dma.done [#allocation6], 2048
    $region33: #{tpu_custom_call.1} parent=1 // pred_fallthru
      _
    %v63 = vld [vmem:[#allocation2] sm:$0xff]
    %v64 = vld [vmem:[#allocation2 + $0x8] sm:$0xff]
    %v65 = vld [vmem:[#allocation2 + $0x10] sm:$0xff]
    %v66 = vld [vmem:[#allocation2 + $0x18] sm:$0xff]
    %v67 = vld [vmem:[#allocation5] sm:$0xff]
    %v68 = vld [vmem:[#allocation5 + $0x8] sm:$0xff]
    %v69 = vld [vmem:[#allocation5 + $0x10] sm:$0xff]
    %v70 = vld [vmem:[#allocation5 + $0x18] sm:$0xff]
    %v71 = vld [vmem:[#allocation5 + $0x20] sm:$0xff]
    %v72 = vld [vmem:[#allocation5 + $0x28] sm:$0xff]
    %v73 = vld [vmem:[#allocation5 + $0x30] sm:$0xff]
    %v74 = vld [vmem:[#allocation5 + $0x38] sm:$0xff]
    %v75 = vld [vmem:[#allocation5 + $0x40] sm:$0xff]
    %v76 = vld [vmem:[#allocation5 + $0x48] sm:$0xff]
    %v77 = vld [vmem:[#allocation5 + $0x50] sm:$0xff]
    %v78 = vld [vmem:[#allocation5 + $0x58] sm:$0xff]
    %v79 = vld [vmem:[#allocation5 + $0x60] sm:$0xff]
    %v80 = vld [vmem:[#allocation5 + $0x68] sm:$0xff]
    %v81 = vld [vmem:[#allocation5 + $0x70] sm:$0xff]
    %v82 = vld [vmem:[#allocation5 + $0x78] sm:$0xff]
    %v83 = vld [vmem:[#allocation5 + $0x80] sm:$0xff]
    %v84 = vld [vmem:[#allocation5 + $0x88] sm:$0xff]
    %v85 = vld [vmem:[#allocation5 + $0x90] sm:$0xff]
    %v86 = vld [vmem:[#allocation5 + $0x98] sm:$0xff]
    %v87 = vld [vmem:[#allocation5 + $0xa0] sm:$0xff]
    %v88 = vld [vmem:[#allocation5 + $0xa8] sm:$0xff]
    %v89 = vld [vmem:[#allocation5 + $0xb0] sm:$0xff]
    %v90 = vld [vmem:[#allocation5 + $0xb8] sm:$0xff]
    %v91 = vld [vmem:[#allocation5 + $0xc0] sm:$0xff]
    %v92 = vld [vmem:[#allocation5 + $0xc8] sm:$0xff]
    %v93 = vld [vmem:[#allocation5 + $0xd0] sm:$0xff]
    %v94 = vld [vmem:[#allocation5 + $0xd8] sm:$0xff]
    %v95 = vld [vmem:[#allocation5 + $0xe0] sm:$0xff]
    %v96 = vld [vmem:[#allocation5 + $0xe8] sm:$0xff]
    %v97 = vld [vmem:[#allocation5 + $0xf0] sm:$0xff]
    %v98 = vld [vmem:[#allocation5 + $0xf8] sm:$0xff]
    %v99 = vld [vmem:[#allocation5 + $0x100] sm:$0xff]
    %v100 = vld [vmem:[#allocation5 + $0x108] sm:$0xff]
    %v101 = vld [vmem:[#allocation5 + $0x110] sm:$0xff]
    %v102 = vld [vmem:[#allocation5 + $0x118] sm:$0xff]
    %v103 = vld [vmem:[#allocation5 + $0x120] sm:$0xff]
    %v104 = vld [vmem:[#allocation5 + $0x128] sm:$0xff]
    %v105 = vld [vmem:[#allocation5 + $0x130] sm:$0xff]
    %v106 = vld [vmem:[#allocation5 + $0x138] sm:$0xff]
    %v107 = vld [vmem:[#allocation5 + $0x140] sm:$0xff]
    %v108 = vld [vmem:[#allocation5 + $0x148] sm:$0xff]
    %v109 = vld [vmem:[#allocation5 + $0x150] sm:$0xff]
    %v110 = vld [vmem:[#allocation5 + $0x158] sm:$0xff]
    %v111 = vld [vmem:[#allocation5 + $0x160] sm:$0xff]
    %v112 = vld [vmem:[#allocation5 + $0x168] sm:$0xff]
    %v113 = vld [vmem:[#allocation5 + $0x170] sm:$0xff]
    %v114 = vld [vmem:[#allocation5 + $0x178] sm:$0xff]
    %v115 = vld [vmem:[#allocation5 + $0x180] sm:$0xff]
    %v116 = vld [vmem:[#allocation5 + $0x188] sm:$0xff]
    %v117 = vld [vmem:[#allocation5 + $0x190] sm:$0xff]
    %v118 = vld [vmem:[#allocation5 + $0x198] sm:$0xff]
    %v119 = vld [vmem:[#allocation5 + $0x1a0] sm:$0xff]
    %v120 = vld [vmem:[#allocation5 + $0x1a8] sm:$0xff]
    %v121 = vld [vmem:[#allocation5 + $0x1b0] sm:$0xff]
    %v122 = vld [vmem:[#allocation5 + $0x1b8] sm:$0xff]
    %v123 = vld [vmem:[#allocation5 + $0x1c0] sm:$0xff]
    %v124 = vld [vmem:[#allocation5 + $0x1c8] sm:$0xff]
    %v125 = vld [vmem:[#allocation5 + $0x1d0] sm:$0xff]
    %v126 = vld [vmem:[#allocation5 + $0x1d8] sm:$0xff]
    %v127 = vld [vmem:[#allocation5 + $0x1e0] sm:$0xff]
    %v128 = vld [vmem:[#allocation5 + $0x1e8] sm:$0xff]
    %v129 = vld [vmem:[#allocation5 + $0x1f0] sm:$0xff]
    %v130 = vld [vmem:[#allocation5 + $0x1f8] sm:$0xff]
    %v131 = vld [vmem:[%s2] sm:$0x3]
    %v133 = vlaneseq
    %v134 = vshrl.u32 %v133, 7
    %v135 = vsub.s32 0, %v134
    %v136 = vrot.slane %v131, %v135
    %v137 = vlaneseq
    %v138 = vshrl.u32 %v137, 7
    %v139 = vsub.s32 1, %v138
    %v140 = vrot.slane %v131, %v139
    %v147 = vunpack.c.l.b16 %v63
    %v148 = vunpack.c.h.b16 %v63
    %v149 = vunpack.c.l.b16 %v64
    %v150 = vunpack.c.h.b16 %v64
    %v151 = vunpack.c.l.b16 %v65
    %v152 = vunpack.c.h.b16 %v65
    %v153 = vunpack.c.l.b16 %v66
    %v154 = vunpack.c.h.b16 %v66
    %v155 = vpack.c.b16 %v151, %v147
    %v156 = vpack.c.b16 %v152, %v148
    %v157 = vpack.c.b16 %v153, %v149
    %v158 = vpack.c.b16 %v154, %v150
    %v227 = vunpack.c.l.b16 %v67
    %v228 = vunpack.c.h.b16 %v67
    %v229 = vunpack.c.l.b16 %v68
    %v230 = vunpack.c.h.b16 %v68
    %v231 = vunpack.c.l.b16 %v69
    %v232 = vunpack.c.h.b16 %v69
    %v233 = vunpack.c.l.b16 %v70
    %v234 = vunpack.c.h.b16 %v70
    %v235 = vunpack.c.l.b16 %v71
    %v236 = vunpack.c.h.b16 %v71
    %v237 = vunpack.c.l.b16 %v72
    %v238 = vunpack.c.h.b16 %v72
    %v239 = vunpack.c.l.b16 %v73
    %v240 = vunpack.c.h.b16 %v73
    %v241 = vunpack.c.l.b16 %v74
    %v242 = vunpack.c.h.b16 %v74
    %v243 = vunpack.c.l.b16 %v75
    %v244 = vunpack.c.h.b16 %v75
    %v245 = vunpack.c.l.b16 %v76
    %v246 = vunpack.c.h.b16 %v76
    %v247 = vunpack.c.l.b16 %v77
    %v248 = vunpack.c.h.b16 %v77
    %v249 = vunpack.c.l.b16 %v78
    %v250 = vunpack.c.h.b16 %v78
    %v251 = vunpack.c.l.b16 %v79
    %v252 = vunpack.c.h.b16 %v79
    %v253 = vunpack.c.l.b16 %v80
    %v254 = vunpack.c.h.b16 %v80
    %v255 = vunpack.c.l.b16 %v81
    %v256 = vunpack.c.h.b16 %v81
    %v257 = vunpack.c.l.b16 %v82
    %v258 = vunpack.c.h.b16 %v82
    %v259 = vunpack.c.l.b16 %v83
    %v260 = vunpack.c.h.b16 %v83
    %v261 = vunpack.c.l.b16 %v84
    %v262 = vunpack.c.h.b16 %v84
    %v263 = vunpack.c.l.b16 %v85
    %v264 = vunpack.c.h.b16 %v85
    %v265 = vunpack.c.l.b16 %v86
    %v266 = vunpack.c.h.b16 %v86
    %v267 = vunpack.c.l.b16 %v87
    %v268 = vunpack.c.h.b16 %v87
    %v269 = vunpack.c.l.b16 %v88
    %v270 = vunpack.c.h.b16 %v88
    %v271 = vunpack.c.l.b16 %v89
    %v272 = vunpack.c.h.b16 %v89
    %v273 = vunpack.c.l.b16 %v90
    %v274 = vunpack.c.h.b16 %v90
    %v275 = vunpack.c.l.b16 %v91
    %v276 = vunpack.c.h.b16 %v91
    %v277 = vunpack.c.l.b16 %v92
    %v278 = vunpack.c.h.b16 %v92
    %v279 = vunpack.c.l.b16 %v93
    %v280 = vunpack.c.h.b16 %v93
    %v281 = vunpack.c.l.b16 %v94
    %v282 = vunpack.c.h.b16 %v94
    %v283 = vunpack.c.l.b16 %v95
    %v284 = vunpack.c.h.b16 %v95
    %v285 = vunpack.c.l.b16 %v96
    %v286 = vunpack.c.h.b16 %v96
    %v287 = vunpack.c.l.b16 %v97
    %v288 = vunpack.c.h.b16 %v97
    %v289 = vunpack.c.l.b16 %v98
    %v290 = vunpack.c.h.b16 %v98
    %v291 = vunpack.c.l.b16 %v99
    %v292 = vunpack.c.h.b16 %v99
    %v293 = vunpack.c.l.b16 %v100
    %v294 = vunpack.c.h.b16 %v100
    %v295 = vunpack.c.l.b16 %v101
    %v296 = vunpack.c.h.b16 %v101
    %v297 = vunpack.c.l.b16 %v102
    %v298 = vunpack.c.h.b16 %v102
    %v299 = vunpack.c.l.b16 %v103
    %v300 = vunpack.c.h.b16 %v103
    %v301 = vunpack.c.l.b16 %v104
    %v302 = vunpack.c.h.b16 %v104
    %v303 = vunpack.c.l.b16 %v105
    %v304 = vunpack.c.h.b16 %v105
    %v305 = vunpack.c.l.b16 %v106
    %v306 = vunpack.c.h.b16 %v106
    %v307 = vunpack.c.l.b16 %v107
    %v308 = vunpack.c.h.b16 %v107
    %v309 = vunpack.c.l.b16 %v108
    %v310 = vunpack.c.h.b16 %v108
    %v311 = vunpack.c.l.b16 %v109
    %v312 = vunpack.c.h.b16 %v109
    %v313 = vunpack.c.l.b16 %v110
    %v314 = vunpack.c.h.b16 %v110
    %v315 = vunpack.c.l.b16 %v111
    %v316 = vunpack.c.h.b16 %v111
    %v317 = vunpack.c.l.b16 %v112
    %v318 = vunpack.c.h.b16 %v112
    %v319 = vunpack.c.l.b16 %v113
    %v320 = vunpack.c.h.b16 %v113
    %v321 = vunpack.c.l.b16 %v114
    %v322 = vunpack.c.h.b16 %v114
    %v323 = vunpack.c.l.b16 %v115
    %v324 = vunpack.c.h.b16 %v115
    %v325 = vunpack.c.l.b16 %v116
    %v326 = vunpack.c.h.b16 %v116
    %v327 = vunpack.c.l.b16 %v117
    %v328 = vunpack.c.h.b16 %v117
    %v329 = vunpack.c.l.b16 %v118
    %v330 = vunpack.c.h.b16 %v118
    %v331 = vunpack.c.l.b16 %v119
    %v332 = vunpack.c.h.b16 %v119
    %v333 = vunpack.c.l.b16 %v120
    %v334 = vunpack.c.h.b16 %v120
    %v335 = vunpack.c.l.b16 %v121
    %v336 = vunpack.c.h.b16 %v121
    %v337 = vunpack.c.l.b16 %v122
    %v338 = vunpack.c.h.b16 %v122
    %v339 = vunpack.c.l.b16 %v123
    %v340 = vunpack.c.h.b16 %v123
    %v341 = vunpack.c.l.b16 %v124
    %v342 = vunpack.c.h.b16 %v124
    %v343 = vunpack.c.l.b16 %v125
    %v344 = vunpack.c.h.b16 %v125
    %v345 = vunpack.c.l.b16 %v126
    %v346 = vunpack.c.h.b16 %v126
    %v347 = vunpack.c.l.b16 %v127
    %v348 = vunpack.c.h.b16 %v127
    %v349 = vunpack.c.l.b16 %v128
    %v350 = vunpack.c.h.b16 %v128
    %v351 = vunpack.c.l.b16 %v129
    %v352 = vunpack.c.h.b16 %v129
    %v353 = vunpack.c.l.b16 %v130
    %v354 = vunpack.c.h.b16 %v130
    %v355 = vpack.c.b16 %v229, %v227
    %v356 = vpack.c.b16 %v230, %v228
    %v357 = vpack.c.b16 %v233, %v231
    %v358 = vpack.c.b16 %v234, %v232
    %v359 = vpack.c.b16 %v237, %v235
    %v360 = vpack.c.b16 %v238, %v236
    %v361 = vpack.c.b16 %v241, %v239
    %v362 = vpack.c.b16 %v242, %v240
    %v363 = vpack.c.b16 %v245, %v243
    %v364 = vpack.c.b16 %v246, %v244
    %v365 = vpack.c.b16 %v249, %v247
    %v366 = vpack.c.b16 %v250, %v248
    %v367 = vpack.c.b16 %v253, %v251
    %v368 = vpack.c.b16 %v254, %v252
    %v369 = vpack.c.b16 %v257, %v255
    %v370 = vpack.c.b16 %v258, %v256
    %v371 = vpack.c.b16 %v261, %v259
    %v372 = vpack.c.b16 %v262, %v260
    %v373 = vpack.c.b16 %v265, %v263
    %v374 = vpack.c.b16 %v266, %v264
    %v375 = vpack.c.b16 %v269, %v267
    %v376 = vpack.c.b16 %v270, %v268
    %v377 = vpack.c.b16 %v273, %v271
    %v378 = vpack.c.b16 %v274, %v272
    %v379 = vpack.c.b16 %v277, %v275
    %v380 = vpack.c.b16 %v278, %v276
    %v381 = vpack.c.b16 %v281, %v279
    %v382 = vpack.c.b16 %v282, %v280
    %v383 = vpack.c.b16 %v285, %v283
    %v384 = vpack.c.b16 %v286, %v284
    %v385 = vpack.c.b16 %v289, %v287
    %v386 = vpack.c.b16 %v290, %v288
    %v387 = vpack.c.b16 %v293, %v291
    %v388 = vpack.c.b16 %v294, %v292
    %v389 = vpack.c.b16 %v297, %v295
    %v390 = vpack.c.b16 %v298, %v296
    %v391 = vpack.c.b16 %v301, %v299
    %v392 = vpack.c.b16 %v302, %v300
    %v393 = vpack.c.b16 %v305, %v303
    %v394 = vpack.c.b16 %v306, %v304
    %v395 = vpack.c.b16 %v309, %v307
    %v396 = vpack.c.b16 %v310, %v308
    %v397 = vpack.c.b16 %v313, %v311
    %v398 = vpack.c.b16 %v314, %v312
    %v399 = vpack.c.b16 %v317, %v315
    %v400 = vpack.c.b16 %v318, %v316
    %v401 = vpack.c.b16 %v321, %v319
    %v402 = vpack.c.b16 %v322, %v320
    %v403 = vpack.c.b16 %v325, %v323
    %v404 = vpack.c.b16 %v326, %v324
    %v405 = vpack.c.b16 %v329, %v327
    %v406 = vpack.c.b16 %v330, %v328
    %v407 = vpack.c.b16 %v333, %v331
    %v408 = vpack.c.b16 %v334, %v332
    %v409 = vpack.c.b16 %v337, %v335
    %v410 = vpack.c.b16 %v338, %v336
    %v411 = vpack.c.b16 %v341, %v339
    %v412 = vpack.c.b16 %v342, %v340
    %v413 = vpack.c.b16 %v345, %v343
    %v414 = vpack.c.b16 %v346, %v344
    %v415 = vpack.c.b16 %v349, %v347
    %v416 = vpack.c.b16 %v350, %v348
    %v417 = vpack.c.b16 %v353, %v351
    %v418 = vpack.c.b16 %v354, %v352
    %483 = vmatprep.subr.bf16.mxu0 %v370
    %484 = vmatpush1.bf16.msra.mxu0 %v369
    %485 = vmatprep.subr.bf16.mxu0 %v368
    %486 = vmatpush1.bf16.msra.mxu0 %v367
    %487 = vmatprep.subr.bf16.mxu0 %v366
    %488 = vmatpush1.bf16.msra.mxu0 %v365
    %489 = vmatprep.subr.bf16.mxu0 %v364
    %490 = vmatpush1.bf16.msra.mxu0 %v363
    %491 = vmatprep.subr.bf16.mxu0 %v362
    %492 = vmatpush1.bf16.msra.mxu0 %v361
    %493 = vmatprep.subr.bf16.mxu0 %v360
    %494 = vmatpush1.bf16.msra.mxu0 %v359
    %495 = vmatprep.subr.bf16.mxu0 %v358
    %496 = vmatpush1.bf16.msra.mxu0 %v357
    %497 = vmatprep.subr.bf16.mxu0 %v356
    %498 = vmatpush1.bf16.msra.mxu0 %v355
    %499 = vmatprep.subr.bf16.mxu0 %v386
    %500 = vmatpush2.bf16.msra.mxu0 %v385
    %501 = vmatprep.subr.bf16.mxu0 %v384
    %502 = vmatpush2.bf16.msra.mxu0 %v383
    %503 = vmatprep.subr.bf16.mxu0 %v382
    %504 = vmatpush2.bf16.msra.mxu0 %v381
    %505 = vmatprep.subr.bf16.mxu0 %v380
    %506 = vmatpush2.bf16.msra.mxu0 %v379
    %507 = vmatprep.subr.bf16.mxu0 %v378
    %508 = vmatpush2.bf16.msra.mxu0 %v377
    %509 = vmatprep.subr.bf16.mxu0 %v376
    %510 = vmatpush2.bf16.msra.mxu0 %v375
    %511 = vmatprep.subr.bf16.mxu0 %v374
    %512 = vmatpush2.bf16.msra.mxu0 %v373
    %513 = vmatprep.subr.bf16.mxu0 %v372
    %514 = vmatpush2.bf16.msra.mxu0 %v371
    %515 = vmatprep.mubr.bf16.mxu0 %v156
    %516 = vmatmul.mubr.bf16.gmra.mxu0 %v155
    %v517 = vpop.f32.mrf.mxu0
    %v518 = vadd.f32 %v136, %v517
    %v519 = vpop.f32.mrf.mxu0
    %v520 = vadd.f32 %v140, %v519
    %v521 = vpop.f32.mrf.mxu0
    %v522 = vadd.f32 %v136, %v521
    %v523 = vpop.f32.mrf.mxu0
    %v524 = vadd.f32 %v140, %v523
    %525 = vdwg.mxu0
    %526 = vmatprep.subr.bf16.mxu0 %v402
    %527 = vmatpush1.bf16.msra.mxu0 %v401
    %528 = vmatprep.subr.bf16.mxu0 %v400
    %529 = vmatpush1.bf16.msra.mxu0 %v399
    %530 = vmatprep.subr.bf16.mxu0 %v398
    %531 = vmatpush1.bf16.msra.mxu0 %v397
    %532 = vmatprep.subr.bf16.mxu0 %v396
    %533 = vmatpush1.bf16.msra.mxu0 %v395
    %534 = vmatprep.subr.bf16.mxu0 %v394
    %535 = vmatpush1.bf16.msra.mxu0 %v393
    %536 = vmatprep.subr.bf16.mxu0 %v392
    %537 = vmatpush1.bf16.msra.mxu0 %v391
    %538 = vmatprep.subr.bf16.mxu0 %v390
    %539 = vmatpush1.bf16.msra.mxu0 %v389
    %540 = vmatprep.subr.bf16.mxu0 %v388
    %541 = vmatpush1.bf16.msra.mxu0 %v387
    %542 = vmatprep.subr.bf16.mxu0 %v418
    %543 = vmatpush2.bf16.msra.mxu0 %v417
    %544 = vmatprep.subr.bf16.mxu0 %v416
    %545 = vmatpush2.bf16.msra.mxu0 %v415
    %546 = vmatprep.subr.bf16.mxu0 %v414
    %547 = vmatpush2.bf16.msra.mxu0 %v413
    %548 = vmatprep.subr.bf16.mxu0 %v412
    %549 = vmatpush2.bf16.msra.mxu0 %v411
    %550 = vmatprep.subr.bf16.mxu0 %v410
    %551 = vmatpush2.bf16.msra.mxu0 %v409
    %552 = vmatprep.subr.bf16.mxu0 %v408
    %553 = vmatpush2.bf16.msra.mxu0 %v407
    %554 = vmatprep.subr.bf16.mxu0 %v406
    %555 = vmatpush2.bf16.msra.mxu0 %v405
    %556 = vmatprep.subr.bf16.mxu0 %v404
    %557 = vmatpush2.bf16.msra.mxu0 %v403
    %558 = vmatprep.mubr.bf16.mxu0 %v158
    %559 = vmatmul.mubr.bf16.gmra.mxu0 %v157
    %v560 = vpop.f32.mrf.mxu0
    %v561 = vadd.f32 %v518, %v560
    %v562 = vpop.f32.mrf.mxu0
    %v563 = vadd.f32 %v520, %v562
    %v564 = vpop.f32.mrf.mxu0
    %v565 = vadd.f32 %v522, %v564
    %v566 = vpop.f32.mrf.mxu0
    %v567 = vadd.f32 %v524, %v566
    %568 = vdwg.mxu0
    %v569 = vmax.f32 %v561, 0.0
    %v570 = vmax.f32 %v563, 0.0
    %v571 = vmax.f32 %v565, 0.0
    %v572 = vmax.f32 %v567, 0.0
    %v573 = vpack.c.bf16 %v571, %v569
    %v574 = vpack.c.bf16 %v572, %v570
    %v575 = vld [vmem:[#allocation7] sm:$0xf]
    %v576 = vld [vmem:[#allocation7 + $0x4] sm:$0xf]
    %v577 = vld [vmem:[#allocation7 + $0x8] sm:$0xf]
    %v578 = vld [vmem:[#allocation7 + $0xc] sm:$0xf]
    %v579 = vld [vmem:[#allocation7 + $0x10] sm:$0xf]
    %v580 = vld [vmem:[#allocation7 + $0x14] sm:$0xf]
    %v581 = vld [vmem:[#allocation7 + $0x18] sm:$0xf]
    %v582 = vld [vmem:[#allocation7 + $0x1c] sm:$0xf]
    %v583 = vld [vmem:[#allocation7 + $0x20] sm:$0xf]
    %v584 = vld [vmem:[#allocation7 + $0x24] sm:$0xf]
    %v585 = vld [vmem:[#allocation7 + $0x28] sm:$0xf]
    %v586 = vld [vmem:[#allocation7 + $0x2c] sm:$0xf]
    %v587 = vld [vmem:[#allocation7 + $0x30] sm:$0xf]
    %v588 = vld [vmem:[#allocation7 + $0x34] sm:$0xf]
    %v589 = vld [vmem:[#allocation7 + $0x38] sm:$0xf]
    %v590 = vld [vmem:[#allocation7 + $0x3c] sm:$0xf]
    %v591 = vld [vmem:[#allocation7 + $0x40] sm:$0xf]
    %v592 = vld [vmem:[#allocation7 + $0x44] sm:$0xf]
    %v593 = vld [vmem:[#allocation7 + $0x48] sm:$0xf]
    %v594 = vld [vmem:[#allocation7 + $0x4c] sm:$0xf]
    %v595 = vld [vmem:[#allocation7 + $0x50] sm:$0xf]
    %v596 = vld [vmem:[#allocation7 + $0x54] sm:$0xf]
    %v597 = vld [vmem:[#allocation7 + $0x58] sm:$0xf]
    %v598 = vld [vmem:[#allocation7 + $0x5c] sm:$0xf]
    %v599 = vld [vmem:[#allocation7 + $0x60] sm:$0xf]
    %v600 = vld [vmem:[#allocation7 + $0x64] sm:$0xf]
    %v601 = vld [vmem:[#allocation7 + $0x68] sm:$0xf]
    %v602 = vld [vmem:[#allocation7 + $0x6c] sm:$0xf]
    %v603 = vld [vmem:[#allocation7 + $0x70] sm:$0xf]
    %v604 = vld [vmem:[#allocation7 + $0x74] sm:$0xf]
    %v605 = vld [vmem:[#allocation7 + $0x78] sm:$0xf]
    %v606 = vld [vmem:[#allocation7 + $0x7c] sm:$0xf]
    %v607 = vld [vmem:[%s4] sm:$0x1]
    %v609 = vlaneseq
    %v610 = vshrl.u32 %v609, 7
    %v611 = vsub.s32 0, %v610
    %v612 = vrot.slane %v607, %v611
    %v646 = vunpack.c.l.b16 %v575
    %v647 = vunpack.c.l.b16 %v576
    %v648 = vunpack.c.l.b16 %v577
    %v649 = vunpack.c.l.b16 %v578
    %v650 = vunpack.c.l.b16 %v579
    %v651 = vunpack.c.l.b16 %v580
    %v652 = vunpack.c.l.b16 %v581
    %v653 = vunpack.c.l.b16 %v582
    %v654 = vunpack.c.l.b16 %v583
    %v655 = vunpack.c.l.b16 %v584
    %v656 = vunpack.c.l.b16 %v585
    %v657 = vunpack.c.l.b16 %v586
    %v658 = vunpack.c.l.b16 %v587
    %v659 = vunpack.c.l.b16 %v588
    %v660 = vunpack.c.l.b16 %v589
    %v661 = vunpack.c.l.b16 %v590
    %v662 = vunpack.c.l.b16 %v591
    %v663 = vunpack.c.l.b16 %v592
    %v664 = vunpack.c.l.b16 %v593
    %v665 = vunpack.c.l.b16 %v594
    %v666 = vunpack.c.l.b16 %v595
    %v667 = vunpack.c.l.b16 %v596
    %v668 = vunpack.c.l.b16 %v597
    %v669 = vunpack.c.l.b16 %v598
    %v670 = vunpack.c.l.b16 %v599
    %v671 = vunpack.c.l.b16 %v600
    %v672 = vunpack.c.l.b16 %v601
    %v673 = vunpack.c.l.b16 %v602
    %v674 = vunpack.c.l.b16 %v603
    %v675 = vunpack.c.l.b16 %v604
    %v676 = vunpack.c.l.b16 %v605
    %v677 = vunpack.c.l.b16 %v606
    %v678 = vpack.c.b16 %v647, %v646
    %v679 = vpack.c.b16 %v649, %v648
    %v680 = vpack.c.b16 %v651, %v650
    %v681 = vpack.c.b16 %v653, %v652
    %v682 = vpack.c.b16 %v655, %v654
    %v683 = vpack.c.b16 %v657, %v656
    %v684 = vpack.c.b16 %v659, %v658
    %v685 = vpack.c.b16 %v661, %v660
    %v686 = vpack.c.b16 %v663, %v662
    %v687 = vpack.c.b16 %v665, %v664
    %v688 = vpack.c.b16 %v667, %v666
    %v689 = vpack.c.b16 %v669, %v668
    %v690 = vpack.c.b16 %v671, %v670
    %v691 = vpack.c.b16 %v673, %v672
    %v692 = vpack.c.b16 %v675, %v674
    %v693 = vpack.c.b16 %v677, %v676
    %710 = vmatprep.subr.bf16.mxu0 0
    %711 = vmatpush1.bf16.msra.mxu0 %v685
    %712 = vmatprep.subr.bf16.mxu0 0
    %713 = vmatpush1.bf16.msra.mxu0 %v684
    %714 = vmatprep.subr.bf16.mxu0 0
    %715 = vmatpush1.bf16.msra.mxu0 %v683
    %716 = vmatprep.subr.bf16.mxu0 0
    %717 = vmatpush1.bf16.msra.mxu0 %v682
    %718 = vmatprep.subr.bf16.mxu0 0
    %719 = vmatpush1.bf16.msra.mxu0 %v681
    %720 = vmatprep.subr.bf16.mxu0 0
    %721 = vmatpush1.bf16.msra.mxu0 %v680
    %722 = vmatprep.subr.bf16.mxu0 0
    %723 = vmatpush1.bf16.msra.mxu0 %v679
    %724 = vmatprep.subr.bf16.mxu0 0
    %725 = vmatpush1.bf16.msra.mxu0 %v678
    %726 = vmatprep.subr.bf16.mxu0 0
    %727 = vmatpush2.bf16.msra.mxu0 %v693
    %728 = vmatprep.subr.bf16.mxu0 0
    %729 = vmatpush2.bf16.msra.mxu0 %v692
    %730 = vmatprep.subr.bf16.mxu0 0
    %731 = vmatpush2.bf16.msra.mxu0 %v691
    %732 = vmatprep.subr.bf16.mxu0 0
    %733 = vmatpush2.bf16.msra.mxu0 %v690
    %734 = vmatprep.subr.bf16.mxu0 0
    %735 = vmatpush2.bf16.msra.mxu0 %v689
    %736 = vmatprep.subr.bf16.mxu0 0
    %737 = vmatpush2.bf16.msra.mxu0 %v688
    %738 = vmatprep.subr.bf16.mxu0 0
    %739 = vmatpush2.bf16.msra.mxu0 %v687
    %740 = vmatprep.subr.bf16.mxu0 0
    %741 = vmatpush2.bf16.msra.mxu0 %v686
    %742 = vmatprep.mubr.bf16.mxu0 %v574
    %743 = vmatmul.mubr.bf16.gmra.mxu0 %v573
    %v744 = vpop.f32.mrf.mxu0
    %v745 = vadd.f32 %v612, %v744
    %v746 = vpop.f32.mrf.mxu0
    %v747 = vpop.f32.mrf.mxu0
    %v748 = vadd.f32 %v612, %v747
    %v749 = vpop.f32.mrf.mxu0
    %750 = vdwg.mxu0
    %751 = vst [vmem:[#allocation8] sm:$0xff] %v745
    %752 = vst [vmem:[#allocation8 + $0x8] sm:$0xff] %v748
    // Predicated region
    $region34: #{tpu_custom_call.1} parent=1 // pred_check
      _
    $region35: #{tpu_custom_call.1} parent=1 // pred_check_branch
      %754 = sbr.rel (0) target = $region37
    $region36: #{tpu_custom_call.1} parent=1 // pred_region
      %s756 = ssub.s32 256, 256
      %757 = vsyncadd [#allocation4], %s756
      %s758 = sshll.u32 [#allocation8], 4
      %s759 = int_to_ptr.vmem [resolvable:$true] %s758
      %764 = dma.vmem_to_hbm [thread:$0]  %s759, 256, %s5, [#allocation4], 128, 128, 8
    $region37: #{tpu_custom_call.1} parent=1 // pred_fallthru
      _
    // Predicated region
    $region38: #{tpu_custom_call.1} parent=1 // pred_check
      _
    $region39: #{tpu_custom_call.1} parent=1 // pred_check_branch
      %766 = sbr.rel (0) target = $region41
    $region40: #{tpu_custom_call.1} parent=1 // pred_region
      %767 = dma.done [#allocation4], 256
    $region41: #{tpu_custom_call.1} parent=1 // pred_fallthru
      _
    %768 = vsyncpa [#allocation3], 1
    %769 = vsyncpa [#allocation6], 1
    %770 = vsyncpa [#allocation4], 1

</llo_original>
